<compile_context>
chip_gen: v6e
topology: v6e:2x2x1
jax: 0.10.0
libtpu: 0.0.40
codegen_flags: <defaults>
</compile_context>

<pallas_src>
import functools

import jax
import jax.numpy as jnp
from jax.experimental import pallas as pl
from jax.experimental.pallas import tpu as pltpu  # noqa: F401  (kept for the scaling TODO)

HIDDEN_LAYER_DIM = 128
INIT_NODE_FEATURES_DIM = 15
NUM_RELATIONS = 4
NODE_PAD = 128  # pad node axis to a lane-dense multiple of 128

# The per-relation column slices of the concatenated weight assume Cout is lane-aligned.
assert HIDDEN_LAYER_DIM % 128 == 0, "HIDDEN_LAYER_DIM must be a multiple of 128 lanes"


# ----------------------------- Pallas kernel ------------------------------- #

def _fused_rgcn_kernel(x_ref, a_ref, w1_ref, b1_ref, w2_ref, b2_ref, p_ref, o_ref,
                       *, num_relations, cout):
    # x_ref:  [Np, Cinp]           node features (zero-padded rows and feature columns)
    # a_ref:  [R, Np, Np]          row-normalized per-relation adjacency (zero-padded)
    # w*_ref: [Cinp, (R+1)*Cout]   [W_root | W_1 | ... | W_R] concatenated along Cout
    # b*_ref: [1, Cout]            f32
    # p_ref:  [G, Np]              mean-pooling matrix (zero columns for padded nodes), f32
    # o_ref:  [G, Cout]            f32
    #
    # x/a/w may be bf16 (MXU inputs); every accumulation is f32.

    def rgcn_layer(h, w_cat_ref, b_ref):
        mxu_dtype = w_cat_ref.dtype
        # One wide MXU call for root + all relation feature transforms (f32 accumulate).
        h_all = jnp.dot(h.astype(mxu_dtype), w_cat_ref[...],
                        preferred_element_type=jnp.float32)        # [Np, (R+1)*Cout] f32
        acc = h_all[:, :cout] + b_ref[...]                          # root term + bias
        # NOTE: padded node rows carry relu(bias) after this layer; the zero columns of A
        # and of the pooling matrix guarantee it never reaches real nodes or the output.
        for r in range(num_relations):                              # static unroll
            lo = (r + 1) * cout                                     # 128-lane aligned slice
            # Index the adjacency Ref per relation: one aligned [Np,Np] VMEM window feeds
            # the MXU directly; the full [R,Np,Np] block is never pulled into vregs.
            acc = acc + jnp.dot(a_ref[r],
                                h_all[:, lo:lo + cout].astype(a_ref.dtype),
                                preferred_element_type=jnp.float32)
        return jnp.maximum(acc, 0.0)                                # ReLU

    h1 = rgcn_layer(x_ref[...], w1_ref, b1_ref)                     # [Np, Cout] f32
    h2 = rgcn_layer(h1, w2_ref, b2_ref)                             # [Np, Cout] f32
    # Global mean pool: kept f32 (tiny matmul, exact 1/count weights, lane-dense output).
    o_ref[...] = jnp.dot(p_ref[...], h2, preferred_element_type=jnp.float32)


# ----------------------------- glue (plain JAX) ----------------------------- #

def build_relation_adjacency(edge_index, edge_type, num_nodes, num_relations):
    """Dense per-relation, row-normalized adjacency. A[r, i, j] = 1/deg_r(i)."""
    src, dst = edge_index[0], edge_index[1]  # messages flow src -> dst
    cnt = jnp.zeros((num_relations, num_nodes, num_nodes), jnp.float32)
    cnt = cnt.at[edge_type, dst, src].add(1.0)
    deg = cnt.sum(axis=-1, keepdims=True)
    return cnt / jnp.where(deg > 0, deg, 1.0)


def build_pool_matrix(batch, num_nodes, num_graphs):
    onehot = (batch[None, :] == jnp.arange(num_graphs)[:, None]).astype(jnp.float32)
    counts = onehot.sum(axis=-1, keepdims=True)
    return onehot / jnp.where(counts > 0, counts, 1.0)


def init_params(key):
    k1, k2, k3, k4 = jax.random.split(key, 4)

    def glorot(k, shape):
        fan_in, fan_out = shape[-2], shape[-1]
        lim = (6.0 / (fan_in + fan_out)) ** 0.5
        return jax.random.uniform(k, shape, jnp.float32, -lim, lim)

    return {
        "conv1": {
            "W": glorot(k1, (NUM_RELATIONS, INIT_NODE_FEATURES_DIM, HIDDEN_LAYER_DIM)),
            "W_root": glorot(k2, (INIT_NODE_FEATURES_DIM, HIDDEN_LAYER_DIM)),
            "b": jnp.zeros((HIDDEN_LAYER_DIM,), jnp.float32),
        },
        "conv2": {
            "W": glorot(k3, (NUM_RELATIONS, HIDDEN_LAYER_DIM, HIDDEN_LAYER_DIM)),
            "W_root": glorot(k4, (HIDDEN_LAYER_DIM, HIDDEN_LAYER_DIM)),
            "b": jnp.zeros((HIDDEN_LAYER_DIM,), jnp.float32),
        },
    }


def _cat_weights(p):
    # [Cin, (R+1)*Cout] = [W_root | W_1 | ... | W_R]  (column concat)
    return jnp.concatenate([p["W_root"]] + [p["W"][r] for r in range(NUM_RELATIONS)],
                           axis=1)


def basic_rgcn_forward(params, x, edge_index, edge_type, batch, num_graphs,
                       *, use_bf16=False):
    N, cin = x.shape
    R, C, G = NUM_RELATIONS, HIDDEN_LAYER_DIM, num_graphs
    npad = max(NODE_PAD, ((N + 127) // 128) * 128)
    cinp = ((cin + 127) // 128) * 128
    mxu_dtype = jnp.bfloat16 if use_bf16 else jnp.float32

    A = build_relation_adjacency(edge_index, edge_type, N, R)   # [R, N, N]
    P = build_pool_matrix(batch, N, G)                          # [G, N]

    # Zero-pad node axis to a multiple of 128 and the feature axis to 128 (lane-dense,
    # full MXU tiles, no masked loads).  MXU inputs optionally bf16, accumulation f32.
    x_p = jnp.pad(x, ((0, npad - N), (0, cinp - cin))).astype(mxu_dtype)
    A_p = jnp.pad(A, ((0, 0), (0, npad - N), (0, npad - N))).astype(mxu_dtype)
    P_p = jnp.pad(P, ((0, 0), (0, npad - N)))                   # stays f32

    w1 = jnp.pad(_cat_weights(params["conv1"]),
                 ((0, cinp - cin), (0, 0))).astype(mxu_dtype)   # [Cinp, (R+1)*C]
    w2 = _cat_weights(params["conv2"]).astype(mxu_dtype)        # [C,    (R+1)*C]
    b1 = params["conv1"]["b"].reshape(1, -1)                    # f32
    b2 = params["conv2"]["b"].reshape(1, -1)                    # f32

    kernel = functools.partial(_fused_rgcn_kernel, num_relations=R, cout=C)
    return pl.pallas_call(
        kernel,
        out_shape=jax.ShapeDtypeStruct((G, C), jnp.float32),
        in_specs=[
            pl.BlockSpec((npad, cinp), lambda: (0, 0)),
            pl.BlockSpec((R, npad, npad), lambda: (0, 0, 0)),
            pl.BlockSpec((cinp, (R + 1) * C), lambda: (0, 0)),
            pl.BlockSpec((1, C), lambda: (0, 0)),
            pl.BlockSpec((C, (R + 1) * C), lambda: (0, 0)),
            pl.BlockSpec((1, C), lambda: (0, 0)),
            pl.BlockSpec((G, npad), lambda: (0, 0)),
        ],
        out_specs=pl.BlockSpec((G, C), lambda: (0, 0)),
    )(x_p, A_p, w1, b1, w2, b2, P_p)


def basic_rgcn_reference(params, x, edge_index, edge_type, batch, num_graphs,
                         *, use_bf16=False):
    """Pure-JAX reference (unpadded). With use_bf16=True it applies the same bf16-input /
    f32-accumulate casts as the kernel, so the comparison stays tight."""
    N = x.shape[0]
    A = build_relation_adjacency(edge_index, edge_type, N, NUM_RELATIONS)
    P = build_pool_matrix(batch, N, num_graphs)
    dt = jnp.bfloat16 if use_bf16 else jnp.float32
    A = A.astype(dt)

    def layer(h, p):
        h_c = h.astype(dt)
        out = jnp.dot(h_c, p["W_root"].astype(dt),
                      preferred_element_type=jnp.float32) + p["b"]
        for r in range(NUM_RELATIONS):
            hw = jnp.dot(h_c, p["W"][r].astype(dt), preferred_element_type=jnp.float32)
            out = out + jnp.dot(A[r], hw.astype(dt), preferred_element_type=jnp.float32)
        return jnp.maximum(out, 0.0)

    h = layer(x, params["conv1"])
    h = layer(h, params["conv2"])
    return jnp.dot(P, h, preferred_element_type=jnp.float32)


# ----------------------------- main ----------------------------------------- #

if __name__ == "__main__":
    key = jax.random.PRNGKey(0)
    k_param, k_x, k_src, k_dst, k_type = jax.random.split(key, 5)

    N = 16          # total nodes across the batch
    E = 40          # edges
    G = 2           # graphs in the batch

    params = init_params(k_param)

    x = jax.random.normal(k_x, (N, INIT_NODE_FEATURES_DIM), jnp.float32)
    # keep edges inside each graph: nodes 0..7 -> graph 0, nodes 8..15 -> graph 1
    src_local = jax.random.randint(k_src, (E,), 0, N // G)
    dst_local = jax.random.randint(k_dst, (E,), 0, N // G)
    graph_of_edge = (jnp.arange(E) % G) * (N // G)
    edge_index = jnp.stack([src_local + graph_of_edge, dst_local + graph_of_edge])
    edge_type = jax.random.randint(k_type, (E,), 0, NUM_RELATIONS)
    batch = jnp.concatenate([jnp.zeros(N // G, jnp.int32), jnp.ones(N // G, jnp.int32)])

    # Exact f32 path.
    out_f32 = basic_rgcn_forward(params, x, edge_index, edge_type, batch, G,
                                 use_bf16=False)
    out_f32 = jax.block_until_ready(out_f32)
    ref_f32 = basic_rgcn_reference(params, x, edge_index, edge_type, batch, G,
                                   use_bf16=False)
    assert out_f32.shape == (G, HIDDEN_LAYER_DIM)
    assert jnp.allclose(out_f32, ref_f32, atol=1e-4, rtol=1e-4)

    # Fast path: bf16 MXU inputs, f32 accumulation (checked vs a matching-cast reference).
    out_bf16 = basic_rgcn_forward(params, x, edge_index, edge_type, batch, G,
                                  use_bf16=True)
    out_bf16 = jax.block_until_ready(out_bf16)
    ref_bf16 = basic_rgcn_reference(params, x, edge_index, edge_type, batch, G,
                                    use_bf16=True)
    assert jnp.allclose(out_bf16, ref_bf16, atol=1e-2, rtol=1e-2)

    print("KERNEL_OK")
</pallas_src>

<mosaic_0001>
module attributes {stable_mosaic.version = 11 : i64} {
  func.func @_fused_rgcn_kernel(%arg0: memref<128x128xf32, #tpu.memory_space<vmem>>, %arg1: memref<4x128x128xf32, #tpu.memory_space<vmem>>, %arg2: memref<128x640xf32, #tpu.memory_space<vmem>>, %arg3: memref<1x128xf32, #tpu.memory_space<vmem>>, %arg4: memref<128x640xf32, #tpu.memory_space<vmem>>, %arg5: memref<1x128xf32, #tpu.memory_space<vmem>>, %arg6: memref<2x128xf32, #tpu.memory_space<vmem>>, %arg7: memref<2x128xf32, #tpu.memory_space<vmem>>) attributes {dimension_semantics = [], scalar_prefetch = 0 : i64, scratch_operands = 0 : i64, tpu.core_type = #tpu.core_type<tc>} {
    %c0 = arith.constant 0 : index
    %c0_0 = arith.constant 0 : index
    %0 = vector.load %arg0[%c0, %c0_0] : memref<128x128xf32, #tpu.memory_space<vmem>>, vector<128x128xf32>
    %c0_1 = arith.constant 0 : index
    %c0_2 = arith.constant 0 : index
    %1 = vector.load %arg2[%c0_1, %c0_2] : memref<128x640xf32, #tpu.memory_space<vmem>>, vector<128x640xf32>
    %cst = arith.constant dense<0.000000e+00> : vector<128x640xf32>
    %2 = tpu.matmul %0, %1, %cst {dimension_numbers = #tpu.dot_dimension_numbers<[1], [0], [0], [1], [0, 0, 1, 1], [], []>} : vector<128x128xf32>, vector<128x640xf32>, vector<128x640xf32> -> vector<128x640xf32>
    %3 = vector.extract_strided_slice %2 {offsets = [0, 0], sizes = [128, 128], strides = [1, 1]} : vector<128x640xf32> to vector<128x128xf32>
    %c0_3 = arith.constant 0 : index
    %c0_4 = arith.constant 0 : index
    %4 = vector.load %arg3[%c0_3, %c0_4] : memref<1x128xf32, #tpu.memory_space<vmem>>, vector<1x128xf32>
    %5 = vector.broadcast %4 : vector<1x128xf32> to vector<128x128xf32>
    %6 = arith.addf %3, %5 : vector<128x128xf32>
    %c0_5 = arith.constant 0 : index
    %c0_6 = arith.constant 0 : index
    %c0_7 = arith.constant 0 : index
    %7 = vector.load %arg1[%c0_5, %c0_6, %c0_7] : memref<4x128x128xf32, #tpu.memory_space<vmem>>, vector<1x128x128xf32>
    %8 = vector.shape_cast %7 : vector<1x128x128xf32> to vector<128x128xf32>
    %9 = vector.extract_strided_slice %2 {offsets = [0, 128], sizes = [128, 128], strides = [1, 1]} : vector<128x640xf32> to vector<128x128xf32>
    %cst_8 = arith.constant dense<0.000000e+00> : vector<128x128xf32>
    %10 = tpu.matmul %8, %9, %cst_8 {dimension_numbers = #tpu.dot_dimension_numbers<[1], [0], [0], [1], [0, 0, 1, 1], [], []>} : vector<128x128xf32>, vector<128x128xf32>, vector<128x128xf32> -> vector<128x128xf32>
    %11 = arith.addf %6, %10 : vector<128x128xf32>
    %c1 = arith.constant 1 : index
    %c0_9 = arith.constant 0 : index
    %c0_10 = arith.constant 0 : index
    %12 = vector.load %arg1[%c1, %c0_9, %c0_10] : memref<4x128x128xf32, #tpu.memory_space<vmem>>, vector<1x128x128xf32>
    %13 = vector.shape_cast %12 : vector<1x128x128xf32> to vector<128x128xf32>
    %14 = vector.extract_strided_slice %2 {offsets = [0, 256], sizes = [128, 128], strides = [1, 1]} : vector<128x640xf32> to vector<128x128xf32>
    %cst_11 = arith.constant dense<0.000000e+00> : vector<128x128xf32>
    %15 = tpu.matmul %13, %14, %cst_11 {dimension_numbers = #tpu.dot_dimension_numbers<[1], [0], [0], [1], [0, 0, 1, 1], [], []>} : vector<128x128xf32>, vector<128x128xf32>, vector<128x128xf32> -> vector<128x128xf32>
    %16 = arith.addf %11, %15 : vector<128x128xf32>
    %c2 = arith.constant 2 : index
    %c0_12 = arith.constant 0 : index
    %c0_13 = arith.constant 0 : index
    %17 = vector.load %arg1[%c2, %c0_12, %c0_13] : memref<4x128x128xf32, #tpu.memory_space<vmem>>, vector<1x128x128xf32>
    %18 = vector.shape_cast %17 : vector<1x128x128xf32> to vector<128x128xf32>
    %19 = vector.extract_strided_slice %2 {offsets = [0, 384], sizes = [128, 128], strides = [1, 1]} : vector<128x640xf32> to vector<128x128xf32>
    %cst_14 = arith.constant dense<0.000000e+00> : vector<128x128xf32>
    %20 = tpu.matmul %18, %19, %cst_14 {dimension_numbers = #tpu.dot_dimension_numbers<[1], [0], [0], [1], [0, 0, 1, 1], [], []>} : vector<128x128xf32>, vector<128x128xf32>, vector<128x128xf32> -> vector<128x128xf32>
    %21 = arith.addf %16, %20 : vector<128x128xf32>
    %c3 = arith.constant 3 : index
    %c0_15 = arith.constant 0 : index
    %c0_16 = arith.constant 0 : index
    %22 = vector.load %arg1[%c3, %c0_15, %c0_16] : memref<4x128x128xf32, #tpu.memory_space<vmem>>, vector<1x128x128xf32>
    %23 = vector.shape_cast %22 : vector<1x128x128xf32> to vector<128x128xf32>
    %24 = vector.extract_strided_slice %2 {offsets = [0, 512], sizes = [128, 128], strides = [1, 1]} : vector<128x640xf32> to vector<128x128xf32>
    %cst_17 = arith.constant dense<0.000000e+00> : vector<128x128xf32>
    %25 = tpu.matmul %23, %24, %cst_17 {dimension_numbers = #tpu.dot_dimension_numbers<[1], [0], [0], [1], [0, 0, 1, 1], [], []>} : vector<128x128xf32>, vector<128x128xf32>, vector<128x128xf32> -> vector<128x128xf32>
    %26 = arith.addf %21, %25 : vector<128x128xf32>
    %cst_18 = arith.constant 0.000000e+00 : f32
    %27 = vector.broadcast %cst_18 : f32 to vector<128x128xf32>
    %28 = arith.maximumf %26, %27 : vector<128x128xf32>
    %c0_19 = arith.constant 0 : index
    %c0_20 = arith.constant 0 : index
    %29 = vector.load %arg4[%c0_19, %c0_20] : memref<128x640xf32, #tpu.memory_space<vmem>>, vector<128x640xf32>
    %cst_21 = arith.constant dense<0.000000e+00> : vector<128x640xf32>
    %30 = tpu.matmul %28, %29, %cst_21 {dimension_numbers = #tpu.dot_dimension_numbers<[1], [0], [0], [1], [0, 0, 1, 1], [], []>} : vector<128x128xf32>, vector<128x640xf32>, vector<128x640xf32> -> vector<128x640xf32>
    %31 = vector.extract_strided_slice %30 {offsets = [0, 0], sizes = [128, 128], strides = [1, 1]} : vector<128x640xf32> to vector<128x128xf32>
    %c0_22 = arith.constant 0 : index
    %c0_23 = arith.constant 0 : index
    %32 = vector.load %arg5[%c0_22, %c0_23] : memref<1x128xf32, #tpu.memory_space<vmem>>, vector<1x128xf32>
    %33 = vector.broadcast %32 : vector<1x128xf32> to vector<128x128xf32>
    %34 = arith.addf %31, %33 : vector<128x128xf32>
    %c0_24 = arith.constant 0 : index
    %c0_25 = arith.constant 0 : index
    %c0_26 = arith.constant 0 : index
    %35 = vector.load %arg1[%c0_24, %c0_25, %c0_26] : memref<4x128x128xf32, #tpu.memory_space<vmem>>, vector<1x128x128xf32>
    %36 = vector.shape_cast %35 : vector<1x128x128xf32> to vector<128x128xf32>
    %37 = vector.extract_strided_slice %30 {offsets = [0, 128], sizes = [128, 128], strides = [1, 1]} : vector<128x640xf32> to vector<128x128xf32>
    %cst_27 = arith.constant dense<0.000000e+00> : vector<128x128xf32>
    %38 = tpu.matmul %36, %37, %cst_27 {dimension_numbers = #tpu.dot_dimension_numbers<[1], [0], [0], [1], [0, 0, 1, 1], [], []>} : vector<128x128xf32>, vector<128x128xf32>, vector<128x128xf32> -> vector<128x128xf32>
    %39 = arith.addf %34, %38 : vector<128x128xf32>
    %c1_28 = arith.constant 1 : index
    %c0_29 = arith.constant 0 : index
    %c0_30 = arith.constant 0 : index
    %40 = vector.load %arg1[%c1_28, %c0_29, %c0_30] : memref<4x128x128xf32, #tpu.memory_space<vmem>>, vector<1x128x128xf32>
    %41 = vector.shape_cast %40 : vector<1x128x128xf32> to vector<128x128xf32>
    %42 = vector.extract_strided_slice %30 {offsets = [0, 256], sizes = [128, 128], strides = [1, 1]} : vector<128x640xf32> to vector<128x128xf32>
    %cst_31 = arith.constant dense<0.000000e+00> : vector<128x128xf32>
    %43 = tpu.matmul %41, %42, %cst_31 {dimension_numbers = #tpu.dot_dimension_numbers<[1], [0], [0], [1], [0, 0, 1, 1], [], []>} : vector<128x128xf32>, vector<128x128xf32>, vector<128x128xf32> -> vector<128x128xf32>
    %44 = arith.addf %39, %43 : vector<128x128xf32>
    %c2_32 = arith.constant 2 : index
    %c0_33 = arith.constant 0 : index
    %c0_34 = arith.constant 0 : index
    %45 = vector.load %arg1[%c2_32, %c0_33, %c0_34] : memref<4x128x128xf32, #tpu.memory_space<vmem>>, vector<1x128x128xf32>
    %46 = vector.shape_cast %45 : vector<1x128x128xf32> to vector<128x128xf32>
    %47 = vector.extract_strided_slice %30 {offsets = [0, 384], sizes = [128, 128], strides = [1, 1]} : vector<128x640xf32> to vector<128x128xf32>
    %cst_35 = arith.constant dense<0.000000e+00> : vector<128x128xf32>
    %48 = tpu.matmul %46, %47, %cst_35 {dimension_numbers = #tpu.dot_dimension_numbers<[1], [0], [0], [1], [0, 0, 1, 1], [], []>} : vector<128x128xf32>, vector<128x128xf32>, vector<128x128xf32> -> vector<128x128xf32>
    %49 = arith.addf %44, %48 : vector<128x128xf32>
    %c3_36 = arith.constant 3 : index
    %c0_37 = arith.constant 0 : index
    %c0_38 = arith.constant 0 : index
    %50 = vector.load %arg1[%c3_36, %c0_37, %c0_38] : memref<4x128x128xf32, #tpu.memory_space<vmem>>, vector<1x128x128xf32>
    %51 = vector.shape_cast %50 : vector<1x128x128xf32> to vector<128x128xf32>
    %52 = vector.extract_strided_slice %30 {offsets = [0, 512], sizes = [128, 128], strides = [1, 1]} : vector<128x640xf32> to vector<128x128xf32>
    %cst_39 = arith.constant dense<0.000000e+00> : vector<128x128xf32>
    %53 = tpu.matmul %51, %52, %cst_39 {dimension_numbers = #tpu.dot_dimension_numbers<[1], [0], [0], [1], [0, 0, 1, 1], [], []>} : vector<128x128xf32>, vector<128x128xf32>, vector<128x128xf32> -> vector<128x128xf32>
    %54 = arith.addf %49, %53 : vector<128x128xf32>
    %cst_40 = arith.constant 0.000000e+00 : f32
    %55 = vector.broadcast %cst_40 : f32 to vector<128x128xf32>
    %56 = arith.maximumf %54, %55 : vector<128x128xf32>
    %c0_41 = arith.constant 0 : index
    %c0_42 = arith.constant 0 : index
    %57 = vector.load %arg6[%c0_41, %c0_42] : memref<2x128xf32, #tpu.memory_space<vmem>>, vector<2x128xf32>
    %cst_43 = arith.constant dense<0.000000e+00> : vector<2x128xf32>
    %58 = tpu.matmul %57, %56, %cst_43 {dimension_numbers = #tpu.dot_dimension_numbers<[1], [0], [0], [1], [0, 0, 1, 1], [], []>} : vector<2x128xf32>, vector<128x128xf32>, vector<2x128xf32> -> vector<2x128xf32>
    %c0_44 = arith.constant 0 : index
    %c0_45 = arith.constant 0 : index
    %59 = vector.load %arg7[%c0_44, %c0_45] : memref<2x128xf32, #tpu.memory_space<vmem>>, vector<2x128xf32>
    tpu.vector_store %arg7[%c0_44, %c0_45], %58 {strides = array<i32>} : memref<2x128xf32, #tpu.memory_space<vmem>>, vector<2x128xf32>,
    return
  }
}

</mosaic_0001>

<llo_original>
// kernel: tpu_custom_call.1
$region0: #{tpu_custom_call.1}
  #allocation0 [shape = 'u32[]', space=smem, size = 0x4, offset = 0x4, fixed_abs, tag = 'smem constant byte address 0x4 - core index']
  #allocation1 [shape = 'u32[144,128]{1,0:T(1,128)}', space=vmem, size = 0x12000, scoped, tag = 'internal scratch']
  %s0 = inlined_call_operand.hbm [shape: f32[128,128], index: 0, kind: input, shape index: {}]
  %s1 = inlined_call_operand.hbm [shape: f32[4,128,128], index: 1, kind: input, shape index: {}]
  %s2 = inlined_call_operand.hbm [shape: f32[128,640], index: 2, kind: input, shape index: {}]
  %s3 = inlined_call_operand.vmem [shape: f32[1,128], index: 3, kind: input, shape index: {}]
  %s4 = inlined_call_operand.hbm [shape: f32[128,640], index: 4, kind: input, shape index: {}]
  %s5 = inlined_call_operand.vmem [shape: f32[1,128], index: 5, kind: input, shape index: {}]
  %s6 = inlined_call_operand.vmem [shape: f32[2,128], index: 6, kind: input, shape index: {}]
  %s7 = inlined_call_operand.hbm [shape: f32[2,128], index: 7, kind: output, shape index: {}]
  %s8 = sld [smem:[#allocation0]]
  $region54: #{tpu_custom_call.1} parent=0
    _
  %s10 = ssub.s32 1, %s8
  %s11 = scalar_select 0, %s10, %s8
  $region1: #{tpu_custom_call.1} parent=0
    #allocation2 [shape = 'u8[65536]{0}', space=vmem, size = 0x10000, scoped, tag = 'input window, operand 0, single buffered']
    #allocation3 [shape = 's32[1]{0}', space=sflag, size = 0x4, scoped, tag = 'scoped memory for tpu_custom_call.1']
    #allocation4 [shape = 's32[1]{0}', space=sflag, size = 0x4, scoped, tag = 'scoped memory for tpu_custom_call.1']
    #allocation5 [shape = 'u8[262144]{0}', space=vmem, size = 0x40000, scoped, tag = 'input window, operand 1, single buffered']
    #allocation6 [shape = 's32[1]{0}', space=sflag, size = 0x4, scoped, tag = 'scoped memory for tpu_custom_call.1']
    #allocation7 [shape = 'u8[327680]{0}', space=vmem, size = 0x50000, scoped, tag = 'input window, operand 2, single buffered']
    #allocation8 [shape = 'u8[327680]{0}', space=vmem, size = 0x50000, scoped, tag = 'input window, operand 4, single buffered']
    #allocation9 [shape = 's32[1]{0}', space=sflag, size = 0x4, scoped, tag = 'scoped memory for tpu_custom_call.1']
    #allocation10 [shape = 'u8[1024]{0}', space=vmem, size = 0x400, scoped, tag = 'output window, operand 0, single buffered']
    %12 = vsyncpa [#allocation3], 0
    %13 = vsyncpa [#allocation6], 0
    %14 = vsyncpa [#allocation9], 0
    %15 = vsyncpa [#allocation4], 0
    // Predicated region
    $region2: #{tpu_custom_call.1} parent=1 // pred_check
      _
    $region3: #{tpu_custom_call.1} parent=1 // pred_check_branch
      %17 = sbr.rel (0) target = $region5
    $region4: #{tpu_custom_call.1} parent=1 // pred_region
      %s19 = ssub.s32 2048, 2048
      %20 = vsyncadd [#allocation3], %s19
      %s21 = sshll.u32 [#allocation2], 4
      %s22 = int_to_ptr.vmem [resolvable:$true] %s21
      %27 = dma.hbm_to_vmem [thread:$0]  %s0, 2048, %s22, [#allocation3], 128, 128, 8
    $region5: #{tpu_custom_call.1} parent=1 // pred_fallthru
      _
    // Predicated region
    $region6: #{tpu_custom_call.1} parent=1 // pred_check
      _
    $region7: #{tpu_custom_call.1} parent=1 // pred_check_branch
      %29 = sbr.rel (0) target = $region9
    $region8: #{tpu_custom_call.1} parent=1 // pred_region
      %s31 = ssub.s32 8192, 8192
      %32 = vsyncadd [#allocation6], %s31
      %s33 = sshll.u32 [#allocation5], 4
      %s34 = int_to_ptr.vmem [resolvable:$true] %s33
      %39 = dma.hbm_to_vmem [thread:$0]  %s1, 8192, %s34, [#allocation6], 128, 128, 8
    $region9: #{tpu_custom_call.1} parent=1 // pred_fallthru
      _
    // Predicated region
    $region10: #{tpu_custom_call.1} parent=1 // pred_check
      _
    $region11: #{tpu_custom_call.1} parent=1 // pred_check_branch
      %41 = sbr.rel (0) target = $region13
    $region12: #{tpu_custom_call.1} parent=1 // pred_region
      %s43 = ssub.s32 10240, 10240
      %44 = vsyncadd [#allocation6], %s43
      %s45 = sshll.u32 [#allocation7], 4
      %s46 = int_to_ptr.vmem [resolvable:$true] %s45
      %51 = dma.hbm_to_vmem [thread:$0]  %s2, 10240, %s46, [#allocation6], 640, 640, 40
    $region13: #{tpu_custom_call.1} parent=1 // pred_fallthru
      _
    // Predicated region
    $region14: #{tpu_custom_call.1} parent=1 // pred_check
      _
    $region15: #{tpu_custom_call.1} parent=1 // pred_check_branch
      %53 = sbr.rel (0) target = $region17
    $region16: #{tpu_custom_call.1} parent=1 // pred_region
      _
    $region17: #{tpu_custom_call.1} parent=1 // pred_fallthru
      _
    // Predicated region
    $region18: #{tpu_custom_call.1} parent=1 // pred_check
      _
    $region19: #{tpu_custom_call.1} parent=1 // pred_check_branch
      %55 = sbr.rel (0) target = $region21
    $region20: #{tpu_custom_call.1} parent=1 // pred_region
      %s57 = ssub.s32 10240, 10240
      %58 = vsyncadd [#allocation9], %s57
      %s59 = sshll.u32 [#allocation8], 4
      %s60 = int_to_ptr.vmem [resolvable:$true] %s59
      %65 = dma.hbm_to_vmem [thread:$0]  %s4, 10240, %s60, [#allocation9], 640, 640, 40
    $region21: #{tpu_custom_call.1} parent=1 // pred_fallthru
      _
    // Predicated region
    $region22: #{tpu_custom_call.1} parent=1 // pred_check
      _
    $region23: #{tpu_custom_call.1} parent=1 // pred_check_branch
      %67 = sbr.rel (0) target = $region25
    $region24: #{tpu_custom_call.1} parent=1 // pred_region
      _
    $region25: #{tpu_custom_call.1} parent=1 // pred_fallthru
      _
    // Predicated region
    $region26: #{tpu_custom_call.1} parent=1 // pred_check
      _
    $region27: #{tpu_custom_call.1} parent=1 // pred_check_branch
      %69 = sbr.rel (0) target = $region29
    $region28: #{tpu_custom_call.1} parent=1 // pred_region
      _
    $region29: #{tpu_custom_call.1} parent=1 // pred_fallthru
      _
    // Predicated region
    $region30: #{tpu_custom_call.1} parent=1 // pred_check
      _
    $region31: #{tpu_custom_call.1} parent=1 // pred_check_branch
      %71 = sbr.rel (0) target = $region33
    $region32: #{tpu_custom_call.1} parent=1 // pred_region
      %72 = dma.done [#allocation3], 2048
    $region33: #{tpu_custom_call.1} parent=1 // pred_fallthru
      _
    // Predicated region
    $region34: #{tpu_custom_call.1} parent=1 // pred_check
      _
    $region35: #{tpu_custom_call.1} parent=1 // pred_check_branch
      %74 = sbr.rel (0) target = $region37
    $region36: #{tpu_custom_call.1} parent=1 // pred_region
      %75 = dma.done [#allocation6], 8192
    $region37: #{tpu_custom_call.1} parent=1 // pred_fallthru
      _
    // Predicated region
    $region38: #{tpu_custom_call.1} parent=1 // pred_check
      _
    $region39: #{tpu_custom_call.1} parent=1 // pred_check_branch
      %77 = sbr.rel (0) target = $region41
    $region40: #{tpu_custom_call.1} parent=1 // pred_region
      %78 = dma.done [#allocation6], 10240
    $region41: #{tpu_custom_call.1} parent=1 // pred_fallthru
      _
    // Predicated region
    $region42: #{tpu_custom_call.1} parent=1 // pred_check
      _
    $region43: #{tpu_custom_call.1} parent=1 // pred_check_branch
      %80 = sbr.rel (0) target = $region45
    $region44: #{tpu_custom_call.1} parent=1 // pred_region
      %81 = dma.done [#allocation9], 10240
    $region45: #{tpu_custom_call.1} parent=1 // pred_fallthru
      _
    %v82 = vld [vmem:[#allocation2] sm:$0xff]
    %v83 = vld [vmem:[#allocation2 + $0x8] sm:$0xff]
    %v84 = vld [vmem:[#allocation2 + $0x10] sm:$0xff]
    %v85 = vld [vmem:[#allocation2 + $0x18] sm:$0xff]
    %v86 = vld [vmem:[#allocation2 + $0x20] sm:$0xff]
    %v87 = vld [vmem:[#allocation2 + $0x28] sm:$0xff]
    %v88 = vld [vmem:[#allocation2 + $0x30] sm:$0xff]
    %v89 = vld [vmem:[#allocation2 + $0x38] sm:$0xff]
    %v90 = vld [vmem:[#allocation2 + $0x40] sm:$0xff]
    %v91 = vld [vmem:[#allocation2 + $0x48] sm:$0xff]
    %v92 = vld [vmem:[#allocation2 + $0x50] sm:$0xff]
    %v93 = vld [vmem:[#allocation2 + $0x58] sm:$0xff]
    %v94 = vld [vmem:[#allocation2 + $0x60] sm:$0xff]
    %v95 = vld [vmem:[#allocation2 + $0x68] sm:$0xff]
    %v96 = vld [vmem:[#allocation2 + $0x70] sm:$0xff]
    %v97 = vld [vmem:[#allocation2 + $0x78] sm:$0xff]
    %v98 = vld [vmem:[#allocation7] sm:$0xff]
    %v99 = vld [vmem:[#allocation7 + $0x8] sm:$0xff]
    %v100 = vld [vmem:[#allocation7 + $0x10] sm:$0xff]
    %v101 = vld [vmem:[#allocation7 + $0x18] sm:$0xff]
    %v102 = vld [vmem:[#allocation7 + $0x20] sm:$0xff]
    %v103 = vld [vmem:[#allocation7 + $0x28] sm:$0xff]
    %v104 = vld [vmem:[#allocation7 + $0x30] sm:$0xff]
    %v105 = vld [vmem:[#allocation7 + $0x38] sm:$0xff]
    %v106 = vld [vmem:[#allocation7 + $0x40] sm:$0xff]
    %v107 = vld [vmem:[#allocation7 + $0x48] sm:$0xff]
    %v108 = vld [vmem:[#allocation7 + $0x50] sm:$0xff]
    %v109 = vld [vmem:[#allocation7 + $0x58] sm:$0xff]
    %v110 = vld [vmem:[#allocation7 + $0x60] sm:$0xff]
    %v111 = vld [vmem:[#allocation7 + $0x68] sm:$0xff]
    %v112 = vld [vmem:[#allocation7 + $0x70] sm:$0xff]
    %v113 = vld [vmem:[#allocation7 + $0x78] sm:$0xff]
    %v114 = vld [vmem:[#allocation7 + $0x80] sm:$0xff]
    %v115 = vld [vmem:[#allocation7 + $0x88] sm:$0xff]
    %v116 = vld [vmem:[#allocation7 + $0x90] sm:$0xff]
    %v117 = vld [vmem:[#allocation7 + $0x98] sm:$0xff]
    %v118 = vld [vmem:[#allocation7 + $0xa0] sm:$0xff]
    %v119 = vld [vmem:[#allocation7 + $0xa8] sm:$0xff]
    %v120 = vld [vmem:[#allocation7 + $0xb0] sm:$0xff]
    %v121 = vld [vmem:[#allocation7 + $0xb8] sm:$0xff]
    %v122 = vld [vmem:[#allocation7 + $0xc0] sm:$0xff]
    %v123 = vld [vmem:[#allocation7 + $0xc8] sm:$0xff]
    %v124 = vld [vmem:[#allocation7 + $0xd0] sm:$0xff]
    %v125 = vld [vmem:[#allocation7 + $0xd8] sm:$0xff]
    %v126 = vld [vmem:[#allocation7 + $0xe0] sm:$0xff]
    %v127 = vld [vmem:[#allocation7 + $0xe8] sm:$0xff]
    %v128 = vld [vmem:[#allocation7 + $0xf0] sm:$0xff]
    %v129 = vld [vmem:[#allocation7 + $0xf8] sm:$0xff]
    %v130 = vld [vmem:[#allocation7 + $0x100] sm:$0xff]
    %v131 = vld [vmem:[#allocation7 + $0x108] sm:$0xff]
    %v132 = vld [vmem:[#allocation7 + $0x110] sm:$0xff]
    %v133 = vld [vmem:[#allocation7 + $0x118] sm:$0xff]
    %v134 = vld [vmem:[#allocation7 + $0x120] sm:$0xff]
    %v135 = vld [vmem:[#allocation7 + $0x128] sm:$0xff]
    %v136 = vld [vmem:[#allocation7 + $0x130] sm:$0xff]
    %v137 = vld [vmem:[#allocation7 + $0x138] sm:$0xff]
    %v138 = vld [vmem:[#allocation7 + $0x140] sm:$0xff]
    %v139 = vld [vmem:[#allocation7 + $0x148] sm:$0xff]
    %v140 = vld [vmem:[#allocation7 + $0x150] sm:$0xff]
    %v141 = vld [vmem:[#allocation7 + $0x158] sm:$0xff]
    %v142 = vld [vmem:[#allocation7 + $0x160] sm:$0xff]
    %v143 = vld [vmem:[#allocation7 + $0x168] sm:$0xff]
    %v144 = vld [vmem:[#allocation7 + $0x170] sm:$0xff]
    %v145 = vld [vmem:[#allocation7 + $0x178] sm:$0xff]
    %v146 = vld [vmem:[#allocation7 + $0x180] sm:$0xff]
    %v147 = vld [vmem:[#allocation7 + $0x188] sm:$0xff]
    %v148 = vld [vmem:[#allocation7 + $0x190] sm:$0xff]
    %v149 = vld [vmem:[#allocation7 + $0x198] sm:$0xff]
    %v150 = vld [vmem:[#allocation7 + $0x1a0] sm:$0xff]
    %v151 = vld [vmem:[#allocation7 + $0x1a8] sm:$0xff]
    %v152 = vld [vmem:[#allocation7 + $0x1b0] sm:$0xff]
    %v153 = vld [vmem:[#allocation7 + $0x1b8] sm:$0xff]
    %v154 = vld [vmem:[#allocation7 + $0x1c0] sm:$0xff]
    %v155 = vld [vmem:[#allocation7 + $0x1c8] sm:$0xff]
    %v156 = vld [vmem:[#allocation7 + $0x1d0] sm:$0xff]
    %v157 = vld [vmem:[#allocation7 + $0x1d8] sm:$0xff]
    %v158 = vld [vmem:[#allocation7 + $0x1e0] sm:$0xff]
    %v159 = vld [vmem:[#allocation7 + $0x1e8] sm:$0xff]
    %v160 = vld [vmem:[#allocation7 + $0x1f0] sm:$0xff]
    %v161 = vld [vmem:[#allocation7 + $0x1f8] sm:$0xff]
    %v162 = vld [vmem:[#allocation7 + $0x200] sm:$0xff]
    %v163 = vld [vmem:[#allocation7 + $0x208] sm:$0xff]
    %v164 = vld [vmem:[#allocation7 + $0x210] sm:$0xff]
    %v165 = vld [vmem:[#allocation7 + $0x218] sm:$0xff]
    %v166 = vld [vmem:[#allocation7 + $0x220] sm:$0xff]
    %v167 = vld [vmem:[#allocation7 + $0x228] sm:$0xff]
    %v168 = vld [vmem:[#allocation7 + $0x230] sm:$0xff]
    %v169 = vld [vmem:[#allocation7 + $0x238] sm:$0xff]
    %v170 = vld [vmem:[#allocation7 + $0x240] sm:$0xff]
    %v171 = vld [vmem:[#allocation7 + $0x248] sm:$0xff]
    %v172 = vld [vmem:[#allocation7 + $0x250] sm:$0xff]
    %v173 = vld [vmem:[#allocation7 + $0x258] sm:$0xff]
    %v174 = vld [vmem:[#allocation7 + $0x260] sm:$0xff]
    %v175 = vld [vmem:[#allocation7 + $0x268] sm:$0xff]
    %v176 = vld [vmem:[#allocation7 + $0x270] sm:$0xff]
    %v177 = vld [vmem:[#allocation7 + $0x278] sm:$0xff]
    %178 = vmatprep.subr.mxu0 %v174
    %179 = vmatpush1.msra.mxu0 %v173
    %180 = vmatprep.subr.mxu0 %v169
    %181 = vmatpush1.msra.mxu0 %v168
    %182 = vmatprep.subr.mxu0 %v164
    %183 = vmatpush1.msra.mxu0 %v163
    %184 = vmatprep.subr.mxu0 %v159
    %185 = vmatpush1.msra.mxu0 %v158
    %186 = vmatprep.subr.mxu0 %v154
    %187 = vmatpush1.msra.mxu0 %v153
    %188 = vmatprep.subr.mxu0 %v149
    %189 = vmatpush1.msra.mxu0 %v148
    %190 = vmatprep.subr.mxu0 %v144
    %191 = vmatpush1.msra.mxu0 %v143
    %192 = vmatprep.subr.mxu0 %v139
    %193 = vmatpush1.msra.mxu0 %v138
    %194 = vmatprep.subr.mxu0 %v134
    %195 = vmatpush1.msra.mxu0 %v133
    %196 = vmatprep.subr.mxu0 %v129
    %197 = vmatpush1.msra.mxu0 %v128
    %198 = vmatprep.subr.mxu0 %v124
    %199 = vmatpush1.msra.mxu0 %v123
    %200 = vmatprep.subr.mxu0 %v119
    %201 = vmatpush1.msra.mxu0 %v118
    %202 = vmatprep.subr.mxu0 %v114
    %203 = vmatpush1.msra.mxu0 %v113
    %204 = vmatprep.subr.mxu0 %v109
    %205 = vmatpush1.msra.mxu0 %v108
    %206 = vmatprep.subr.mxu0 %v104
    %207 = vmatpush1.msra.mxu0 %v103
    %208 = vmatprep.subr.mxu0 %v99
    %209 = vmatpush1.msra.mxu0 %v98
    %210 = vmatprep.subr.mxu0 0.0
    %211 = vmatpush2.msra.mxu0 0.0
    %212 = vmatprep.subr.mxu0 0.0
    %213 = vmatpush2.msra.mxu0 0.0
    %214 = vmatprep.subr.mxu0 0.0
    %215 = vmatpush2.msra.mxu0 0.0
    %216 = vmatprep.subr.mxu0 0.0
    %217 = vmatpush2.msra.mxu0 0.0
    %218 = vmatprep.subr.mxu0 0.0
    %219 = vmatpush2.msra.mxu0 0.0
    %220 = vmatprep.subr.mxu0 0.0
    %221 = vmatpush2.msra.mxu0 0.0
    %222 = vmatprep.subr.mxu0 0.0
    %223 = vmatpush2.msra.mxu0 0.0
    %224 = vmatprep.subr.mxu0 0.0
    %225 = vmatpush2.msra.mxu0 0.0
    %226 = vmatprep.subr.mxu0 0.0
    %227 = vmatpush2.msra.mxu0 0.0
    %228 = vmatprep.subr.mxu0 0.0
    %229 = vmatpush2.msra.mxu0 0.0
    %230 = vmatprep.subr.mxu0 0.0
    %231 = vmatpush2.msra.mxu0 0.0
    %232 = vmatprep.subr.mxu0 0.0
    %233 = vmatpush2.msra.mxu0 0.0
    %234 = vmatprep.subr.mxu0 0.0
    %235 = vmatpush2.msra.mxu0 0.0
    %236 = vmatprep.subr.mxu0 0.0
    %237 = vmatpush2.msra.mxu0 0.0
    %238 = vmatprep.subr.mxu0 0.0
    %239 = vmatpush2.msra.mxu0 0.0
    %240 = vmatprep.subr.mxu0 0.0
    %241 = vmatpush2.msra.mxu0 0.0
    %242 = vmatprep.mubr.f32.mxu0 0.0
    %243 = vmatmul.mubr.f32.gmra.mxu0 %v82
    %v244 = vpop.f32.mrf.mxu0
    %v245 = vadd.f32 0.0, %v244
    %v246 = vpop.f32.mrf.mxu0
    %v247 = vadd.f32 0.0, %v246
    %248 = vmatprep.mubr.f32.mxu0 0.0
    %249 = vmatmul.mubr.f32.gmra.mxu0 %v83
    %v250 = vpop.f32.mrf.mxu0
    %v251 = vadd.f32 0.0, %v250
    %v252 = vpop.f32.mrf.mxu0
    %v253 = vadd.f32 0.0, %v252
    %254 = vmatprep.mubr.f32.mxu0 0.0
    %255 = vmatmul.mubr.f32.gmra.mxu0 %v84
    %v256 = vpop.f32.mrf.mxu0
    %v257 = vadd.f32 0.0, %v256
    %v258 = vpop.f32.mrf.mxu0
    %v259 = vadd.f32 0.0, %v258
    %260 = vmatprep.mubr.f32.mxu0 0.0
    %261 = vmatmul.mubr.f32.gmra.mxu0 %v85
    %v262 = vpop.f32.mrf.mxu0
    %v263 = vadd.f32 0.0, %v262
    %v264 = vpop.f32.mrf.mxu0
    %v265 = vadd.f32 0.0, %v264
    %266 = vmatprep.mubr.f32.mxu0 0.0
    %267 = vmatmul.mubr.f32.gmra.mxu0 %v86
    %v268 = vpop.f32.mrf.mxu0
    %v269 = vadd.f32 0.0, %v268
    %v270 = vpop.f32.mrf.mxu0
    %v271 = vadd.f32 0.0, %v270
    %272 = vmatprep.mubr.f32.mxu0 0.0
    %273 = vmatmul.mubr.f32.gmra.mxu0 %v87
    %v274 = vpop.f32.mrf.mxu0
    %v275 = vadd.f32 0.0, %v274
    %v276 = vpop.f32.mrf.mxu0
    %v277 = vadd.f32 0.0, %v276
    %278 = vmatprep.mubr.f32.mxu0 0.0
    %279 = vmatmul.mubr.f32.gmra.mxu0 %v88
    %v280 = vpop.f32.mrf.mxu0
    %v281 = vadd.f32 0.0, %v280
    %v282 = vpop.f32.mrf.mxu0
    %v283 = vadd.f32 0.0, %v282
    %284 = vmatprep.mubr.f32.mxu0 0.0
    %285 = vmatmul.mubr.f32.gmra.mxu0 %v89
    %v286 = vpop.f32.mrf.mxu0
    %v287 = vadd.f32 0.0, %v286
    %v288 = vpop.f32.mrf.mxu0
    %v289 = vadd.f32 0.0, %v288
    %290 = vmatprep.mubr.f32.mxu0 0.0
    %291 = vmatmul.mubr.f32.gmra.mxu0 %v90
    %v292 = vpop.f32.mrf.mxu0
    %v293 = vadd.f32 0.0, %v292
    %v294 = vpop.f32.mrf.mxu0
    %v295 = vadd.f32 0.0, %v294
    %296 = vmatprep.mubr.f32.mxu0 0.0
    %297 = vmatmul.mubr.f32.gmra.mxu0 %v91
    %v298 = vpop.f32.mrf.mxu0
    %v299 = vadd.f32 0.0, %v298
    %v300 = vpop.f32.mrf.mxu0
    %v301 = vadd.f32 0.0, %v300
    %302 = vmatprep.mubr.f32.mxu0 0.0
    %303 = vmatmul.mubr.f32.gmra.mxu0 %v92
    %v304 = vpop.f32.mrf.mxu0
    %v305 = vadd.f32 0.0, %v304
    %v306 = vpop.f32.mrf.mxu0
    %v307 = vadd.f32 0.0, %v306
    %308 = vmatprep.mubr.f32.mxu0 0.0
    %309 = vmatmul.mubr.f32.gmra.mxu0 %v93
    %v310 = vpop.f32.mrf.mxu0
    %v311 = vadd.f32 0.0, %v310
    %v312 = vpop.f32.mrf.mxu0
    %v313 = vadd.f32 0.0, %v312
    %314 = vmatprep.mubr.f32.mxu0 0.0
    %315 = vmatmul.mubr.f32.gmra.mxu0 %v94
    %v316 = vpop.f32.mrf.mxu0
    %v317 = vadd.f32 0.0, %v316
    %v318 = vpop.f32.mrf.mxu0
    %v319 = vadd.f32 0.0, %v318
    %320 = vmatprep.mubr.f32.mxu0 0.0
    %321 = vmatmul.mubr.f32.gmra.mxu0 %v95
    %v322 = vpop.f32.mrf.mxu0
    %v323 = vadd.f32 0.0, %v322
    %v324 = vpop.f32.mrf.mxu0
    %v325 = vadd.f32 0.0, %v324
    %326 = vmatprep.mubr.f32.mxu0 0.0
    %327 = vmatmul.mubr.f32.gmra.mxu0 %v96
    %v328 = vpop.f32.mrf.mxu0
    %v329 = vadd.f32 0.0, %v328
    %v330 = vpop.f32.mrf.mxu0
    %v331 = vadd.f32 0.0, %v330
    %332 = vmatprep.mubr.f32.mxu0 0.0
    %333 = vmatmul.mubr.f32.gmra.mxu0 %v97
    %v334 = vpop.f32.mrf.mxu0
    %v335 = vadd.f32 0.0, %v334
    %v336 = vpop.f32.mrf.mxu0
    %v337 = vadd.f32 0.0, %v336
    %338 = vdwg.mxu0
    %339 = vmatprep.subr.mxu0 %v176
    %340 = vmatpush1.msra.mxu0 %v175
    %341 = vmatprep.subr.mxu0 %v171
    %342 = vmatpush1.msra.mxu0 %v170
    %343 = vmatprep.subr.mxu0 %v166
    %344 = vmatpush1.msra.mxu0 %v165
    %345 = vmatprep.subr.mxu0 %v161
    %346 = vmatpush1.msra.mxu0 %v160
    %347 = vmatprep.subr.mxu0 %v156
    %348 = vmatpush1.msra.mxu0 %v155
    %349 = vmatprep.subr.mxu0 %v151
    %350 = vmatpush1.msra.mxu0 %v150
    %351 = vmatprep.subr.mxu0 %v146
    %352 = vmatpush1.msra.mxu0 %v145
    %353 = vmatprep.subr.mxu0 %v141
    %354 = vmatpush1.msra.mxu0 %v140
    %355 = vmatprep.subr.mxu0 %v136
    %356 = vmatpush1.msra.mxu0 %v135
    %357 = vmatprep.subr.mxu0 %v131
    %358 = vmatpush1.msra.mxu0 %v130
    %359 = vmatprep.subr.mxu0 %v126
    %360 = vmatpush1.msra.mxu0 %v125
    %361 = vmatprep.subr.mxu0 %v121
    %362 = vmatpush1.msra.mxu0 %v120
    %363 = vmatprep.subr.mxu0 %v116
    %364 = vmatpush1.msra.mxu0 %v115
    %365 = vmatprep.subr.mxu0 %v111
    %366 = vmatpush1.msra.mxu0 %v110
    %367 = vmatprep.subr.mxu0 %v106
    %368 = vmatpush1.msra.mxu0 %v105
    %369 = vmatprep.subr.mxu0 %v101
    %370 = vmatpush1.msra.mxu0 %v100
    %371 = vmatprep.subr.mxu0 0.0
    %372 = vmatpush2.msra.mxu0 0.0
    %373 = vmatprep.subr.mxu0 0.0
    %374 = vmatpush2.msra.mxu0 0.0
    %375 = vmatprep.subr.mxu0 0.0
    %376 = vmatpush2.msra.mxu0 0.0
    %377 = vmatprep.subr.mxu0 0.0
    %378 = vmatpush2.msra.mxu0 0.0
    %379 = vmatprep.subr.mxu0 0.0
    %380 = vmatpush2.msra.mxu0 0.0
    %381 = vmatprep.subr.mxu0 0.0
    %382 = vmatpush2.msra.mxu0 0.0
    %383 = vmatprep.subr.mxu0 0.0
    %384 = vmatpush2.msra.mxu0 0.0
    %385 = vmatprep.subr.mxu0 0.0
    %386 = vmatpush2.msra.mxu0 0.0
    %387 = vmatprep.subr.mxu0 0.0
    %388 = vmatpush2.msra.mxu0 0.0
    %389 = vmatprep.subr.mxu0 0.0
    %390 = vmatpush2.msra.mxu0 0.0
    %391 = vmatprep.subr.mxu0 0.0
    %392 = vmatpush2.msra.mxu0 0.0
    %393 = vmatprep.subr.mxu0 0.0
    %394 = vmatpush2.msra.mxu0 0.0
    %395 = vmatprep.subr.mxu0 0.0
    %396 = vmatpush2.msra.mxu0 0.0
    %397 = vmatprep.subr.mxu0 0.0
    %398 = vmatpush2.msra.mxu0 0.0
    %399 = vmatprep.subr.mxu0 0.0
    %400 = vmatpush2.msra.mxu0 0.0
    %401 = vmatprep.subr.mxu0 0.0
    %402 = vmatpush2.msra.mxu0 0.0
    %403 = vmatprep.mubr.f32.mxu0 0.0
    %404 = vmatmul.mubr.f32.gmra.mxu0 %v82
    %v405 = vpop.f32.mrf.mxu0
    %v406 = vadd.f32 0.0, %v405
    %v407 = vpop.f32.mrf.mxu0
    %v408 = vadd.f32 0.0, %v407
    %409 = vmatprep.mubr.f32.mxu0 0.0
    %410 = vmatmul.mubr.f32.gmra.mxu0 %v83
    %v411 = vpop.f32.mrf.mxu0
    %v412 = vadd.f32 0.0, %v411
    %v413 = vpop.f32.mrf.mxu0
    %v414 = vadd.f32 0.0, %v413
    %415 = vmatprep.mubr.f32.mxu0 0.0
    %416 = vmatmul.mubr.f32.gmra.mxu0 %v84
    %v417 = vpop.f32.mrf.mxu0
    %v418 = vadd.f32 0.0, %v417
    %v419 = vpop.f32.mrf.mxu0
    %v420 = vadd.f32 0.0, %v419
    %421 = vmatprep.mubr.f32.mxu0 0.0
    %422 = vmatmul.mubr.f32.gmra.mxu0 %v85
    %v423 = vpop.f32.mrf.mxu0
    %v424 = vadd.f32 0.0, %v423
    %v425 = vpop.f32.mrf.mxu0
    %v426 = vadd.f32 0.0, %v425
    %427 = vmatprep.mubr.f32.mxu0 0.0
    %428 = vmatmul.mubr.f32.gmra.mxu0 %v86
    %v429 = vpop.f32.mrf.mxu0
    %v430 = vadd.f32 0.0, %v429
    %v431 = vpop.f32.mrf.mxu0
    %v432 = vadd.f32 0.0, %v431
    %433 = vmatprep.mubr.f32.mxu0 0.0
    %434 = vmatmul.mubr.f32.gmra.mxu0 %v87
    %v435 = vpop.f32.mrf.mxu0
    %v436 = vadd.f32 0.0, %v435
    %v437 = vpop.f32.mrf.mxu0
    %v438 = vadd.f32 0.0, %v437
    %439 = vmatprep.mubr.f32.mxu0 0.0
    %440 = vmatmul.mubr.f32.gmra.mxu0 %v88
    %v441 = vpop.f32.mrf.mxu0
    %v442 = vadd.f32 0.0, %v441
    %v443 = vpop.f32.mrf.mxu0
    %v444 = vadd.f32 0.0, %v443
    %445 = vmatprep.mubr.f32.mxu0 0.0
    %446 = vmatmul.mubr.f32.gmra.mxu0 %v89
    %v447 = vpop.f32.mrf.mxu0
    %v448 = vadd.f32 0.0, %v447
    %v449 = vpop.f32.mrf.mxu0
    %v450 = vadd.f32 0.0, %v449
    %451 = vmatprep.mubr.f32.mxu0 0.0
    %452 = vmatmul.mubr.f32.gmra.mxu0 %v90
    %v453 = vpop.f32.mrf.mxu0
    %v454 = vadd.f32 0.0, %v453
    %v455 = vpop.f32.mrf.mxu0
    %v456 = vadd.f32 0.0, %v455
    %457 = vmatprep.mubr.f32.mxu0 0.0
    %458 = vmatmul.mubr.f32.gmra.mxu0 %v91
    %v459 = vpop.f32.mrf.mxu0
    %v460 = vadd.f32 0.0, %v459
    %v461 = vpop.f32.mrf.mxu0
    %v462 = vadd.f32 0.0, %v461
    %463 = vmatprep.mubr.f32.mxu0 0.0
    %464 = vmatmul.mubr.f32.gmra.mxu0 %v92
    %v465 = vpop.f32.mrf.mxu0
    %v466 = vadd.f32 0.0, %v465
    %v467 = vpop.f32.mrf.mxu0
    %v468 = vadd.f32 0.0, %v467
    %469 = vmatprep.mubr.f32.mxu0 0.0
    %470 = vmatmul.mubr.f32.gmra.mxu0 %v93
    %v471 = vpop.f32.mrf.mxu0
    %v472 = vadd.f32 0.0, %v471
    %v473 = vpop.f32.mrf.mxu0
    %v474 = vadd.f32 0.0, %v473
    %475 = vmatprep.mubr.f32.mxu0 0.0
    %476 = vmatmul.mubr.f32.gmra.mxu0 %v94
    %v477 = vpop.f32.mrf.mxu0
    %v478 = vadd.f32 0.0, %v477
    %v479 = vpop.f32.mrf.mxu0
    %v480 = vadd.f32 0.0, %v479
    %481 = vmatprep.mubr.f32.mxu0 0.0
    %482 = vmatmul.mubr.f32.gmra.mxu0 %v95
    %v483 = vpop.f32.mrf.mxu0
    %v484 = vadd.f32 0.0, %v483
    %v485 = vpop.f32.mrf.mxu0
    %v486 = vadd.f32 0.0, %v485
    %487 = vmatprep.mubr.f32.mxu0 0.0
    %488 = vmatmul.mubr.f32.gmra.mxu0 %v96
    %v489 = vpop.f32.mrf.mxu0
    %v490 = vadd.f32 0.0, %v489
    %v491 = vpop.f32.mrf.mxu0
    %v492 = vadd.f32 0.0, %v491
    %493 = vmatprep.mubr.f32.mxu0 0.0
    %494 = vmatmul.mubr.f32.gmra.mxu0 %v97
    %v495 = vpop.f32.mrf.mxu0
    %v496 = vadd.f32 0.0, %v495
    %v497 = vpop.f32.mrf.mxu0
    %v498 = vadd.f32 0.0, %v497
    %499 = vdwg.mxu0
    %500 = vmatprep.subr.mxu0 0.0
    %501 = vmatpush1.msra.mxu0 %v177
    %502 = vmatprep.subr.mxu0 0.0
    %503 = vmatpush1.msra.mxu0 %v172
    %504 = vmatprep.subr.mxu0 0.0
    %505 = vmatpush1.msra.mxu0 %v167
    %506 = vmatprep.subr.mxu0 0.0
    %507 = vmatpush1.msra.mxu0 %v162
    %508 = vmatprep.subr.mxu0 0.0
    %509 = vmatpush1.msra.mxu0 %v157
    %510 = vmatprep.subr.mxu0 0.0
    %511 = vmatpush1.msra.mxu0 %v152
    %512 = vmatprep.subr.mxu0 0.0
    %513 = vmatpush1.msra.mxu0 %v147
    %514 = vmatprep.subr.mxu0 0.0
    %515 = vmatpush1.msra.mxu0 %v142
    %516 = vmatprep.subr.mxu0 0.0
    %517 = vmatpush1.msra.mxu0 %v137
    %518 = vmatprep.subr.mxu0 0.0
    %519 = vmatpush1.msra.mxu0 %v132
    %520 = vmatprep.subr.mxu0 0.0
    %521 = vmatpush1.msra.mxu0 %v127
    %522 = vmatprep.subr.mxu0 0.0
    %523 = vmatpush1.msra.mxu0 %v122
    %524 = vmatprep.subr.mxu0 0.0
    %525 = vmatpush1.msra.mxu0 %v117
    %526 = vmatprep.subr.mxu0 0.0
    %527 = vmatpush1.msra.mxu0 %v112
    %528 = vmatprep.subr.mxu0 0.0
    %529 = vmatpush1.msra.mxu0 %v107
    %530 = vmatprep.subr.mxu0 0.0
    %531 = vmatpush1.msra.mxu0 %v102
    %532 = vmatprep.subr.mxu0 0.0
    %533 = vmatpush2.msra.mxu0 0.0
    %534 = vmatprep.subr.mxu0 0.0
    %535 = vmatpush2.msra.mxu0 0.0
    %536 = vmatprep.subr.mxu0 0.0
    %537 = vmatpush2.msra.mxu0 0.0
    %538 = vmatprep.subr.mxu0 0.0
    %539 = vmatpush2.msra.mxu0 0.0
    %540 = vmatprep.subr.mxu0 0.0
    %541 = vmatpush2.msra.mxu0 0.0
    %542 = vmatprep.subr.mxu0 0.0
    %543 = vmatpush2.msra.mxu0 0.0
    %544 = vmatprep.subr.mxu0 0.0
    %545 = vmatpush2.msra.mxu0 0.0
    %546 = vmatprep.subr.mxu0 0.0
    %547 = vmatpush2.msra.mxu0 0.0
    %548 = vmatprep.subr.mxu0 0.0
    %549 = vmatpush2.msra.mxu0 0.0
    %550 = vmatprep.subr.mxu0 0.0
    %551 = vmatpush2.msra.mxu0 0.0
    %552 = vmatprep.subr.mxu0 0.0
    %553 = vmatpush2.msra.mxu0 0.0
    %554 = vmatprep.subr.mxu0 0.0
    %555 = vmatpush2.msra.mxu0 0.0
    %556 = vmatprep.subr.mxu0 0.0
    %557 = vmatpush2.msra.mxu0 0.0
    %558 = vmatprep.subr.mxu0 0.0
    %559 = vmatpush2.msra.mxu0 0.0
    %560 = vmatprep.subr.mxu0 0.0
    %561 = vmatpush2.msra.mxu0 0.0
    %562 = vmatprep.subr.mxu0 0.0
    %563 = vmatpush2.msra.mxu0 0.0
    %564 = vmatprep.mubr.f32.mxu0 0.0
    %565 = vmatmul.mubr.f32.gmra.mxu0 %v82
    %v566 = vpop.f32.mrf.mxu0
    %v567 = vadd.f32 0.0, %v566
    %v568 = vpop.f32.mrf.mxu0
    %569 = vmatprep.mubr.f32.mxu0 0.0
    %570 = vmatmul.mubr.f32.gmra.mxu0 %v83
    %v571 = vpop.f32.mrf.mxu0
    %v572 = vadd.f32 0.0, %v571
    %v573 = vpop.f32.mrf.mxu0
    %574 = vmatprep.mubr.f32.mxu0 0.0
    %575 = vmatmul.mubr.f32.gmra.mxu0 %v84
    %v576 = vpop.f32.mrf.mxu0
    %v577 = vadd.f32 0.0, %v576
    %v578 = vpop.f32.mrf.mxu0
    %579 = vmatprep.mubr.f32.mxu0 0.0
    %580 = vmatmul.mubr.f32.gmra.mxu0 %v85
    %v581 = vpop.f32.mrf.mxu0
    %v582 = vadd.f32 0.0, %v581
    %v583 = vpop.f32.mrf.mxu0
    %584 = vmatprep.mubr.f32.mxu0 0.0
    %585 = vmatmul.mubr.f32.gmra.mxu0 %v86
    %v586 = vpop.f32.mrf.mxu0
    %v587 = vadd.f32 0.0, %v586
    %v588 = vpop.f32.mrf.mxu0
    %589 = vmatprep.mubr.f32.mxu0 0.0
    %590 = vmatmul.mubr.f32.gmra.mxu0 %v87
    %v591 = vpop.f32.mrf.mxu0
    %v592 = vadd.f32 0.0, %v591
    %v593 = vpop.f32.mrf.mxu0
    %594 = vmatprep.mubr.f32.mxu0 0.0
    %595 = vmatmul.mubr.f32.gmra.mxu0 %v88
    %v596 = vpop.f32.mrf.mxu0
    %v597 = vadd.f32 0.0, %v596
    %v598 = vpop.f32.mrf.mxu0
    %599 = vmatprep.mubr.f32.mxu0 0.0
    %600 = vmatmul.mubr.f32.gmra.mxu0 %v89
    %v601 = vpop.f32.mrf.mxu0
    %v602 = vadd.f32 0.0, %v601
    %v603 = vpop.f32.mrf.mxu0
    %604 = vmatprep.mubr.f32.mxu0 0.0
    %605 = vmatmul.mubr.f32.gmra.mxu0 %v90
    %v606 = vpop.f32.mrf.mxu0
    %v607 = vadd.f32 0.0, %v606
    %v608 = vpop.f32.mrf.mxu0
    %609 = vmatprep.mubr.f32.mxu0 0.0
    %610 = vmatmul.mubr.f32.gmra.mxu0 %v91
    %v611 = vpop.f32.mrf.mxu0
    %v612 = vadd.f32 0.0, %v611
    %v613 = vpop.f32.mrf.mxu0
    %614 = vmatprep.mubr.f32.mxu0 0.0
    %615 = vmatmul.mubr.f32.gmra.mxu0 %v92
    %v616 = vpop.f32.mrf.mxu0
    %v617 = vadd.f32 0.0, %v616
    %v618 = vpop.f32.mrf.mxu0
    %619 = vmatprep.mubr.f32.mxu0 0.0
    %620 = vmatmul.mubr.f32.gmra.mxu0 %v93
    %v621 = vpop.f32.mrf.mxu0
    %v622 = vadd.f32 0.0, %v621
    %v623 = vpop.f32.mrf.mxu0
    %624 = vmatprep.mubr.f32.mxu0 0.0
    %625 = vmatmul.mubr.f32.gmra.mxu0 %v94
    %v626 = vpop.f32.mrf.mxu0
    %v627 = vadd.f32 0.0, %v626
    %v628 = vpop.f32.mrf.mxu0
    %629 = vmatprep.mubr.f32.mxu0 0.0
    %630 = vmatmul.mubr.f32.gmra.mxu0 %v95
    %v631 = vpop.f32.mrf.mxu0
    %v632 = vadd.f32 0.0, %v631
    %v633 = vpop.f32.mrf.mxu0
    %634 = vmatprep.mubr.f32.mxu0 0.0
    %635 = vmatmul.mubr.f32.gmra.mxu0 %v96
    %v636 = vpop.f32.mrf.mxu0
    %v637 = vadd.f32 0.0, %v636
    %v638 = vpop.f32.mrf.mxu0
    %639 = vmatprep.mubr.f32.mxu0 0.0
    %640 = vmatmul.mubr.f32.gmra.mxu0 %v97
    %v641 = vpop.f32.mrf.mxu0
    %v642 = vadd.f32 0.0, %v641
    %v643 = vpop.f32.mrf.mxu0
    %644 = vdwg.mxu0
    %v645 = vld [vmem:[%s3] sm:$0x1]
    %v647 = vlaneseq
    %v648 = vshrl.u32 %v647, 7
    %v649 = vsub.s32 0, %v648
    %v650 = vrot.slane %v645, %v649
    %v652 = vadd.f32 %v245, %v650
    %v653 = vadd.f32 %v251, %v650
    %v654 = vadd.f32 %v257, %v650
    %v655 = vadd.f32 %v263, %v650
    %v656 = vadd.f32 %v269, %v650
    %v657 = vadd.f32 %v275, %v650
    %v658 = vadd.f32 %v281, %v650
    %v659 = vadd.f32 %v287, %v650
    %v660 = vadd.f32 %v293, %v650
    %v661 = vadd.f32 %v299, %v650
    %v662 = vadd.f32 %v305, %v650
    %v663 = vadd.f32 %v311, %v650
    %v664 = vadd.f32 %v317, %v650
    %v665 = vadd.f32 %v323, %v650
    %v666 = vadd.f32 %v329, %v650
    %v667 = vadd.f32 %v335, %v650
    %v668 = vld [vmem:[#allocation5] sm:$0xff]
    %v669 = vld [vmem:[#allocation5 + $0x8] sm:$0xff]
    %v670 = vld [vmem:[#allocation5 + $0x10] sm:$0xff]
    %v671 = vld [vmem:[#allocation5 + $0x18] sm:$0xff]
    %v672 = vld [vmem:[#allocation5 + $0x20] sm:$0xff]
    %v673 = vld [vmem:[#allocation5 + $0x28] sm:$0xff]
    %v674 = vld [vmem:[#allocation5 + $0x30] sm:$0xff]
    %v675 = vld [vmem:[#allocation5 + $0x38] sm:$0xff]
    %v676 = vld [vmem:[#allocation5 + $0x40] sm:$0xff]
    %v677 = vld [vmem:[#allocation5 + $0x48] sm:$0xff]
    %v678 = vld [vmem:[#allocation5 + $0x50] sm:$0xff]
    %v679 = vld [vmem:[#allocation5 + $0x58] sm:$0xff]
    %v680 = vld [vmem:[#allocation5 + $0x60] sm:$0xff]
    %v681 = vld [vmem:[#allocation5 + $0x68] sm:$0xff]
    %v682 = vld [vmem:[#allocation5 + $0x70] sm:$0xff]
    %v683 = vld [vmem:[#allocation5 + $0x78] sm:$0xff]
    %684 = vmatprep.subr.mxu0 0.0
    %685 = vmatpush1.msra.mxu0 %v337
    %686 = vmatprep.subr.mxu0 0.0
    %687 = vmatpush1.msra.mxu0 %v331
    %688 = vmatprep.subr.mxu0 0.0
    %689 = vmatpush1.msra.mxu0 %v325
    %690 = vmatprep.subr.mxu0 0.0
    %691 = vmatpush1.msra.mxu0 %v319
    %692 = vmatprep.subr.mxu0 0.0
    %693 = vmatpush1.msra.mxu0 %v313
    %694 = vmatprep.subr.mxu0 0.0
    %695 = vmatpush1.msra.mxu0 %v307
    %696 = vmatprep.subr.mxu0 0.0
    %697 = vmatpush1.msra.mxu0 %v301
    %698 = vmatprep.subr.mxu0 0.0
    %699 = vmatpush1.msra.mxu0 %v295
    %700 = vmatprep.subr.mxu0 0.0
    %701 = vmatpush1.msra.mxu0 %v289
    %702 = vmatprep.subr.mxu0 0.0
    %703 = vmatpush1.msra.mxu0 %v283
    %704 = vmatprep.subr.mxu0 0.0
    %705 = vmatpush1.msra.mxu0 %v277
    %706 = vmatprep.subr.mxu0 0.0
    %707 = vmatpush1.msra.mxu0 %v271
    %708 = vmatprep.subr.mxu0 0.0
    %709 = vmatpush1.msra.mxu0 %v265
    %710 = vmatprep.subr.mxu0 0.0
    %711 = vmatpush1.msra.mxu0 %v259
    %712 = vmatprep.subr.mxu0 0.0
    %713 = vmatpush1.msra.mxu0 %v253
    %714 = vmatprep.subr.mxu0 0.0
    %715 = vmatpush1.msra.mxu0 %v247
    %716 = vmatprep.subr.mxu0 0.0
    %717 = vmatpush2.msra.mxu0 0.0
    %718 = vmatprep.subr.mxu0 0.0
    %719 = vmatpush2.msra.mxu0 0.0
    %720 = vmatprep.subr.mxu0 0.0
    %721 = vmatpush2.msra.mxu0 0.0
    %722 = vmatprep.subr.mxu0 0.0
    %723 = vmatpush2.msra.mxu0 0.0
    %724 = vmatprep.subr.mxu0 0.0
    %725 = vmatpush2.msra.mxu0 0.0
    %726 = vmatprep.subr.mxu0 0.0
    %727 = vmatpush2.msra.mxu0 0.0
    %728 = vmatprep.subr.mxu0 0.0
    %729 = vmatpush2.msra.mxu0 0.0
    %730 = vmatprep.subr.mxu0 0.0
    %731 = vmatpush2.msra.mxu0 0.0
    %732 = vmatprep.subr.mxu0 0.0
    %733 = vmatpush2.msra.mxu0 0.0
    %734 = vmatprep.subr.mxu0 0.0
    %735 = vmatpush2.msra.mxu0 0.0
    %736 = vmatprep.subr.mxu0 0.0
    %737 = vmatpush2.msra.mxu0 0.0
    %738 = vmatprep.subr.mxu0 0.0
    %739 = vmatpush2.msra.mxu0 0.0
    %740 = vmatprep.subr.mxu0 0.0
    %741 = vmatpush2.msra.mxu0 0.0
    %742 = vmatprep.subr.mxu0 0.0
    %743 = vmatpush2.msra.mxu0 0.0
    %744 = vmatprep.subr.mxu0 0.0
    %745 = vmatpush2.msra.mxu0 0.0
    %746 = vmatprep.subr.mxu0 0.0
    %747 = vmatpush2.msra.mxu0 0.0
    %748 = vmatprep.mubr.f32.mxu0 0.0
    %749 = vmatmul.mubr.f32.gmra.mxu0 %v668
    %v750 = vpop.f32.mrf.mxu0
    %v751 = vadd.f32 0.0, %v750
    %v752 = vpop.f32.mrf.mxu0
    %753 = vmatprep.mubr.f32.mxu0 0.0
    %754 = vmatmul.mubr.f32.gmra.mxu0 %v669
    %v755 = vpop.f32.mrf.mxu0
    %v756 = vadd.f32 0.0, %v755
    %v757 = vpop.f32.mrf.mxu0
    %758 = vmatprep.mubr.f32.mxu0 0.0
    %759 = vmatmul.mubr.f32.gmra.mxu0 %v670
    %v760 = vpop.f32.mrf.mxu0
    %v761 = vadd.f32 0.0, %v760
    %v762 = vpop.f32.mrf.mxu0
    %763 = vmatprep.mubr.f32.mxu0 0.0
    %764 = vmatmul.mubr.f32.gmra.mxu0 %v671
    %v765 = vpop.f32.mrf.mxu0
    %v766 = vadd.f32 0.0, %v765
    %v767 = vpop.f32.mrf.mxu0
    %768 = vmatprep.mubr.f32.mxu0 0.0
    %769 = vmatmul.mubr.f32.gmra.mxu0 %v672
    %v770 = vpop.f32.mrf.mxu0
    %v771 = vadd.f32 0.0, %v770
    %v772 = vpop.f32.mrf.mxu0
    %773 = vmatprep.mubr.f32.mxu0 0.0
    %774 = vmatmul.mubr.f32.gmra.mxu0 %v673
    %v775 = vpop.f32.mrf.mxu0
    %v776 = vadd.f32 0.0, %v775
    %v777 = vpop.f32.mrf.mxu0
    %778 = vmatprep.mubr.f32.mxu0 0.0
    %779 = vmatmul.mubr.f32.gmra.mxu0 %v674
    %v780 = vpop.f32.mrf.mxu0
    %v781 = vadd.f32 0.0, %v780
    %v782 = vpop.f32.mrf.mxu0
    %783 = vmatprep.mubr.f32.mxu0 0.0
    %784 = vmatmul.mubr.f32.gmra.mxu0 %v675
    %v785 = vpop.f32.mrf.mxu0
    %v786 = vadd.f32 0.0, %v785
    %v787 = vpop.f32.mrf.mxu0
    %788 = vmatprep.mubr.f32.mxu0 0.0
    %789 = vmatmul.mubr.f32.gmra.mxu0 %v676
    %v790 = vpop.f32.mrf.mxu0
    %v791 = vadd.f32 0.0, %v790
    %v792 = vpop.f32.mrf.mxu0
    %793 = vmatprep.mubr.f32.mxu0 0.0
    %794 = vmatmul.mubr.f32.gmra.mxu0 %v677
    %v795 = vpop.f32.mrf.mxu0
    %v796 = vadd.f32 0.0, %v795
    %v797 = vpop.f32.mrf.mxu0
    %798 = vmatprep.mubr.f32.mxu0 0.0
    %799 = vmatmul.mubr.f32.gmra.mxu0 %v678
    %v800 = vpop.f32.mrf.mxu0
    %v801 = vadd.f32 0.0, %v800
    %v802 = vpop.f32.mrf.mxu0
    %803 = vmatprep.mubr.f32.mxu0 0.0
    %804 = vmatmul.mubr.f32.gmra.mxu0 %v679
    %v805 = vpop.f32.mrf.mxu0
    %v806 = vadd.f32 0.0, %v805
    %v807 = vpop.f32.mrf.mxu0
    %808 = vmatprep.mubr.f32.mxu0 0.0
    %809 = vmatmul.mubr.f32.gmra.mxu0 %v680
    %v810 = vpop.f32.mrf.mxu0
    %v811 = vadd.f32 0.0, %v810
    %v812 = vpop.f32.mrf.mxu0
    %813 = vmatprep.mubr.f32.mxu0 0.0
    %814 = vmatmul.mubr.f32.gmra.mxu0 %v681
    %v815 = vpop.f32.mrf.mxu0
    %v816 = vadd.f32 0.0, %v815
    %v817 = vpop.f32.mrf.mxu0
    %818 = vmatprep.mubr.f32.mxu0 0.0
    %819 = vmatmul.mubr.f32.gmra.mxu0 %v682
    %v820 = vpop.f32.mrf.mxu0
    %v821 = vadd.f32 0.0, %v820
    %v822 = vpop.f32.mrf.mxu0
    %823 = vmatprep.mubr.f32.mxu0 0.0
    %824 = vmatmul.mubr.f32.gmra.mxu0 %v683
    %v825 = vpop.f32.mrf.mxu0
    %v826 = vadd.f32 0.0, %v825
    %v827 = vpop.f32.mrf.mxu0
    %828 = vdwg.mxu0
    %v829 = vadd.f32 %v652, %v751
    %v830 = vadd.f32 %v653, %v756
    %v831 = vadd.f32 %v654, %v761
    %v832 = vadd.f32 %v655, %v766
    %v833 = vadd.f32 %v656, %v771
    %v834 = vadd.f32 %v657, %v776
    %v835 = vadd.f32 %v658, %v781
    %v836 = vadd.f32 %v659, %v786
    %v837 = vadd.f32 %v660, %v791
    %v838 = vadd.f32 %v661, %v796
    %v839 = vadd.f32 %v662, %v801
    %v840 = vadd.f32 %v663, %v806
    %v841 = vadd.f32 %v664, %v811
    %v842 = vadd.f32 %v665, %v816
    %v843 = vadd.f32 %v666, %v821
    %v844 = vadd.f32 %v667, %v826
    %s845 = scalar_lea.vmem [#allocation5], 128
    %v846 = vld [vmem:[%s845] sm:$0xff]
    %v847 = vld [vmem:[%s845 + $0x8] sm:$0xff]
    %v848 = vld [vmem:[%s845 + $0x10] sm:$0xff]
    %v849 = vld [vmem:[%s845 + $0x18] sm:$0xff]
    %v850 = vld [vmem:[%s845 + $0x20] sm:$0xff]
    %v851 = vld [vmem:[%s845 + $0x28] sm:$0xff]
    %v852 = vld [vmem:[%s845 + $0x30] sm:$0xff]
    %v853 = vld [vmem:[%s845 + $0x38] sm:$0xff]
    %v854 = vld [vmem:[%s845 + $0x40] sm:$0xff]
    %v855 = vld [vmem:[%s845 + $0x48] sm:$0xff]
    %v856 = vld [vmem:[%s845 + $0x50] sm:$0xff]
    %v857 = vld [vmem:[%s845 + $0x58] sm:$0xff]
    %v858 = vld [vmem:[%s845 + $0x60] sm:$0xff]
    %v859 = vld [vmem:[%s845 + $0x68] sm:$0xff]
    %v860 = vld [vmem:[%s845 + $0x70] sm:$0xff]
    %v861 = vld [vmem:[%s845 + $0x78] sm:$0xff]
    %862 = vmatprep.subr.mxu0 0.0
    %863 = vmatpush1.msra.mxu0 %v496
    %864 = vmatprep.subr.mxu0 0.0
    %865 = vmatpush1.msra.mxu0 %v490
    %866 = vmatprep.subr.mxu0 0.0
    %867 = vmatpush1.msra.mxu0 %v484
    %868 = vmatprep.subr.mxu0 0.0
    %869 = vmatpush1.msra.mxu0 %v478
    %870 = vmatprep.subr.mxu0 0.0
    %871 = vmatpush1.msra.mxu0 %v472
    %872 = vmatprep.subr.mxu0 0.0
    %873 = vmatpush1.msra.mxu0 %v466
    %874 = vmatprep.subr.mxu0 0.0
    %875 = vmatpush1.msra.mxu0 %v460
    %876 = vmatprep.subr.mxu0 0.0
    %877 = vmatpush1.msra.mxu0 %v454
    %878 = vmatprep.subr.mxu0 0.0
    %879 = vmatpush1.msra.mxu0 %v448
    %880 = vmatprep.subr.mxu0 0.0
    %881 = vmatpush1.msra.mxu0 %v442
    %882 = vmatprep.subr.mxu0 0.0
    %883 = vmatpush1.msra.mxu0 %v436
    %884 = vmatprep.subr.mxu0 0.0
    %885 = vmatpush1.msra.mxu0 %v430
    %886 = vmatprep.subr.mxu0 0.0
    %887 = vmatpush1.msra.mxu0 %v424
    %888 = vmatprep.subr.mxu0 0.0
    %889 = vmatpush1.msra.mxu0 %v418
    %890 = vmatprep.subr.mxu0 0.0
    %891 = vmatpush1.msra.mxu0 %v412
    %892 = vmatprep.subr.mxu0 0.0
    %893 = vmatpush1.msra.mxu0 %v406
    %894 = vmatprep.subr.mxu0 0.0
    %895 = vmatpush2.msra.mxu0 0.0
    %896 = vmatprep.subr.mxu0 0.0
    %897 = vmatpush2.msra.mxu0 0.0
    %898 = vmatprep.subr.mxu0 0.0
    %899 = vmatpush2.msra.mxu0 0.0
    %900 = vmatprep.subr.mxu0 0.0
    %901 = vmatpush2.msra.mxu0 0.0
    %902 = vmatprep.subr.mxu0 0.0
    %903 = vmatpush2.msra.mxu0 0.0
    %904 = vmatprep.subr.mxu0 0.0
    %905 = vmatpush2.msra.mxu0 0.0
    %906 = vmatprep.subr.mxu0 0.0
    %907 = vmatpush2.msra.mxu0 0.0
    %908 = vmatprep.subr.mxu0 0.0
    %909 = vmatpush2.msra.mxu0 0.0
    %910 = vmatprep.subr.mxu0 0.0
    %911 = vmatpush2.msra.mxu0 0.0
    %912 = vmatprep.subr.mxu0 0.0
    %913 = vmatpush2.msra.mxu0 0.0
    %914 = vmatprep.subr.mxu0 0.0
    %915 = vmatpush2.msra.mxu0 0.0
    %916 = vmatprep.subr.mxu0 0.0
    %917 = vmatpush2.msra.mxu0 0.0
    %918 = vmatprep.subr.mxu0 0.0
    %919 = vmatpush2.msra.mxu0 0.0
    %920 = vmatprep.subr.mxu0 0.0
    %921 = vmatpush2.msra.mxu0 0.0
    %922 = vmatprep.subr.mxu0 0.0
    %923 = vmatpush2.msra.mxu0 0.0
    %924 = vmatprep.subr.mxu0 0.0
    %925 = vmatpush2.msra.mxu0 0.0
    %926 = vmatprep.mubr.f32.mxu0 0.0
    %927 = vmatmul.mubr.f32.gmra.mxu0 %v846
    %v928 = vpop.f32.mrf.mxu0
    %v929 = vadd.f32 0.0, %v928
    %v930 = vpop.f32.mrf.mxu0
    %931 = vmatprep.mubr.f32.mxu0 0.0
    %932 = vmatmul.mubr.f32.gmra.mxu0 %v847
    %v933 = vpop.f32.mrf.mxu0
    %v934 = vadd.f32 0.0, %v933
    %v935 = vpop.f32.mrf.mxu0
    %936 = vmatprep.mubr.f32.mxu0 0.0
    %937 = vmatmul.mubr.f32.gmra.mxu0 %v848
    %v938 = vpop.f32.mrf.mxu0
    %v939 = vadd.f32 0.0, %v938
    %v940 = vpop.f32.mrf.mxu0
    %941 = vmatprep.mubr.f32.mxu0 0.0
    %942 = vmatmul.mubr.f32.gmra.mxu0 %v849
    %v943 = vpop.f32.mrf.mxu0
    %v944 = vadd.f32 0.0, %v943
    %v945 = vpop.f32.mrf.mxu0
    %946 = vmatprep.mubr.f32.mxu0 0.0
    %947 = vmatmul.mubr.f32.gmra.mxu0 %v850
    %v948 = vpop.f32.mrf.mxu0
    %v949 = vadd.f32 0.0, %v948
    %v950 = vpop.f32.mrf.mxu0
    %951 = vmatprep.mubr.f32.mxu0 0.0
    %952 = vmatmul.mubr.f32.gmra.mxu0 %v851
    %v953 = vpop.f32.mrf.mxu0
    %v954 = vadd.f32 0.0, %v953
    %v955 = vpop.f32.mrf.mxu0
    %956 = vmatprep.mubr.f32.mxu0 0.0
    %957 = vmatmul.mubr.f32.gmra.mxu0 %v852
    %v958 = vpop.f32.mrf.mxu0
    %v959 = vadd.f32 0.0, %v958
    %v960 = vpop.f32.mrf.mxu0
    %961 = vmatprep.mubr.f32.mxu0 0.0
    %962 = vmatmul.mubr.f32.gmra.mxu0 %v853
    %v963 = vpop.f32.mrf.mxu0
    %v964 = vadd.f32 0.0, %v963
    %v965 = vpop.f32.mrf.mxu0
    %966 = vmatprep.mubr.f32.mxu0 0.0
    %967 = vmatmul.mubr.f32.gmra.mxu0 %v854
    %v968 = vpop.f32.mrf.mxu0
    %v969 = vadd.f32 0.0, %v968
    %v970 = vpop.f32.mrf.mxu0
    %971 = vmatprep.mubr.f32.mxu0 0.0
    %972 = vmatmul.mubr.f32.gmra.mxu0 %v855
    %v973 = vpop.f32.mrf.mxu0
    %v974 = vadd.f32 0.0, %v973
    %v975 = vpop.f32.mrf.mxu0
    %976 = vmatprep.mubr.f32.mxu0 0.0
    %977 = vmatmul.mubr.f32.gmra.mxu0 %v856
    %v978 = vpop.f32.mrf.mxu0
    %v979 = vadd.f32 0.0, %v978
    %v980 = vpop.f32.mrf.mxu0
    %981 = vmatprep.mubr.f32.mxu0 0.0
    %982 = vmatmul.mubr.f32.gmra.mxu0 %v857
    %v983 = vpop.f32.mrf.mxu0
    %v984 = vadd.f32 0.0, %v983
    %v985 = vpop.f32.mrf.mxu0
    %986 = vmatprep.mubr.f32.mxu0 0.0
    %987 = vmatmul.mubr.f32.gmra.mxu0 %v858
    %v988 = vpop.f32.mrf.mxu0
    %v989 = vadd.f32 0.0, %v988
    %v990 = vpop.f32.mrf.mxu0
    %991 = vmatprep.mubr.f32.mxu0 0.0
    %992 = vmatmul.mubr.f32.gmra.mxu0 %v859
    %v993 = vpop.f32.mrf.mxu0
    %v994 = vadd.f32 0.0, %v993
    %v995 = vpop.f32.mrf.mxu0
    %996 = vmatprep.mubr.f32.mxu0 0.0
    %997 = vmatmul.mubr.f32.gmra.mxu0 %v860
    %v998 = vpop.f32.mrf.mxu0
    %v999 = vadd.f32 0.0, %v998
    %v1000 = vpop.f32.mrf.mxu0
    %1001 = vmatprep.mubr.f32.mxu0 0.0
    %1002 = vmatmul.mubr.f32.gmra.mxu0 %v861
    %v1003 = vpop.f32.mrf.mxu0
    %v1004 = vadd.f32 0.0, %v1003
    %v1005 = vpop.f32.mrf.mxu0
    %1006 = vdwg.mxu0
    %v1007 = vadd.f32 %v829, %v929
    %v1008 = vadd.f32 %v830, %v934
    %v1009 = vadd.f32 %v831, %v939
    %v1010 = vadd.f32 %v832, %v944
    %v1011 = vadd.f32 %v833, %v949
    %v1012 = vadd.f32 %v834, %v954
    %v1013 = vadd.f32 %v835, %v959
    %v1014 = vadd.f32 %v836, %v964
    %v1015 = vadd.f32 %v837, %v969
    %v1016 = vadd.f32 %v838, %v974
    %v1017 = vadd.f32 %v839, %v979
    %v1018 = vadd.f32 %v840, %v984
    %v1019 = vadd.f32 %v841, %v989
    %v1020 = vadd.f32 %v842, %v994
    %v1021 = vadd.f32 %v843, %v999
    %v1022 = vadd.f32 %v844, %v1004
    %s1023 = scalar_lea.vmem [#allocation5], 256
    %v1024 = vld [vmem:[%s1023] sm:$0xff]
    %v1025 = vld [vmem:[%s1023 + $0x8] sm:$0xff]
    %v1026 = vld [vmem:[%s1023 + $0x10] sm:$0xff]
    %v1027 = vld [vmem:[%s1023 + $0x18] sm:$0xff]
    %v1028 = vld [vmem:[%s1023 + $0x20] sm:$0xff]
    %v1029 = vld [vmem:[%s1023 + $0x28] sm:$0xff]
    %v1030 = vld [vmem:[%s1023 + $0x30] sm:$0xff]
    %v1031 = vld [vmem:[%s1023 + $0x38] sm:$0xff]
    %v1032 = vld [vmem:[%s1023 + $0x40] sm:$0xff]
    %v1033 = vld [vmem:[%s1023 + $0x48] sm:$0xff]
    %v1034 = vld [vmem:[%s1023 + $0x50] sm:$0xff]
    %v1035 = vld [vmem:[%s1023 + $0x58] sm:$0xff]
    %v1036 = vld [vmem:[%s1023 + $0x60] sm:$0xff]
    %v1037 = vld [vmem:[%s1023 + $0x68] sm:$0xff]
    %v1038 = vld [vmem:[%s1023 + $0x70] sm:$0xff]
    %v1039 = vld [vmem:[%s1023 + $0x78] sm:$0xff]
    %1040 = vmatprep.subr.mxu0 0.0
    %1041 = vmatpush1.msra.mxu0 %v498
    %1042 = vmatprep.subr.mxu0 0.0
    %1043 = vmatpush1.msra.mxu0 %v492
    %1044 = vmatprep.subr.mxu0 0.0
    %1045 = vmatpush1.msra.mxu0 %v486
    %1046 = vmatprep.subr.mxu0 0.0
    %1047 = vmatpush1.msra.mxu0 %v480
    %1048 = vmatprep.subr.mxu0 0.0
    %1049 = vmatpush1.msra.mxu0 %v474
    %1050 = vmatprep.subr.mxu0 0.0
    %1051 = vmatpush1.msra.mxu0 %v468
    %1052 = vmatprep.subr.mxu0 0.0
    %1053 = vmatpush1.msra.mxu0 %v462
    %1054 = vmatprep.subr.mxu0 0.0
    %1055 = vmatpush1.msra.mxu0 %v456
    %1056 = vmatprep.subr.mxu0 0.0
    %1057 = vmatpush1.msra.mxu0 %v450
    %1058 = vmatprep.subr.mxu0 0.0
    %1059 = vmatpush1.msra.mxu0 %v444
    %1060 = vmatprep.subr.mxu0 0.0
    %1061 = vmatpush1.msra.mxu0 %v438
    %1062 = vmatprep.subr.mxu0 0.0
    %1063 = vmatpush1.msra.mxu0 %v432
    %1064 = vmatprep.subr.mxu0 0.0
    %1065 = vmatpush1.msra.mxu0 %v426
    %1066 = vmatprep.subr.mxu0 0.0
    %1067 = vmatpush1.msra.mxu0 %v420
    %1068 = vmatprep.subr.mxu0 0.0
    %1069 = vmatpush1.msra.mxu0 %v414
    %1070 = vmatprep.subr.mxu0 0.0
    %1071 = vmatpush1.msra.mxu0 %v408
    %1072 = vmatprep.subr.mxu0 0.0
    %1073 = vmatpush2.msra.mxu0 0.0
    %1074 = vmatprep.subr.mxu0 0.0
    %1075 = vmatpush2.msra.mxu0 0.0
    %1076 = vmatprep.subr.mxu0 0.0
    %1077 = vmatpush2.msra.mxu0 0.0
    %1078 = vmatprep.subr.mxu0 0.0
    %1079 = vmatpush2.msra.mxu0 0.0
    %1080 = vmatprep.subr.mxu0 0.0
    %1081 = vmatpush2.msra.mxu0 0.0
    %1082 = vmatprep.subr.mxu0 0.0
    %1083 = vmatpush2.msra.mxu0 0.0
    %1084 = vmatprep.subr.mxu0 0.0
    %1085 = vmatpush2.msra.mxu0 0.0
    %1086 = vmatprep.subr.mxu0 0.0
    %1087 = vmatpush2.msra.mxu0 0.0
    %1088 = vmatprep.subr.mxu0 0.0
    %1089 = vmatpush2.msra.mxu0 0.0
    %1090 = vmatprep.subr.mxu0 0.0
    %1091 = vmatpush2.msra.mxu0 0.0
    %1092 = vmatprep.subr.mxu0 0.0
    %1093 = vmatpush2.msra.mxu0 0.0
    %1094 = vmatprep.subr.mxu0 0.0
    %1095 = vmatpush2.msra.mxu0 0.0
    %1096 = vmatprep.subr.mxu0 0.0
    %1097 = vmatpush2.msra.mxu0 0.0
    %1098 = vmatprep.subr.mxu0 0.0
    %1099 = vmatpush2.msra.mxu0 0.0
    %1100 = vmatprep.subr.mxu0 0.0
    %1101 = vmatpush2.msra.mxu0 0.0
    %1102 = vmatprep.subr.mxu0 0.0
    %1103 = vmatpush2.msra.mxu0 0.0
    %1104 = vmatprep.mubr.f32.mxu0 0.0
    %1105 = vmatmul.mubr.f32.gmra.mxu0 %v1024
    %v1106 = vpop.f32.mrf.mxu0
    %v1107 = vadd.f32 0.0, %v1106
    %v1108 = vpop.f32.mrf.mxu0
    %1109 = vmatprep.mubr.f32.mxu0 0.0
    %1110 = vmatmul.mubr.f32.gmra.mxu0 %v1025
    %v1111 = vpop.f32.mrf.mxu0
    %v1112 = vadd.f32 0.0, %v1111
    %v1113 = vpop.f32.mrf.mxu0
    %1114 = vmatprep.mubr.f32.mxu0 0.0
    %1115 = vmatmul.mubr.f32.gmra.mxu0 %v1026
    %v1116 = vpop.f32.mrf.mxu0
    %v1117 = vadd.f32 0.0, %v1116
    %v1118 = vpop.f32.mrf.mxu0
    %1119 = vmatprep.mubr.f32.mxu0 0.0
    %1120 = vmatmul.mubr.f32.gmra.mxu0 %v1027
    %v1121 = vpop.f32.mrf.mxu0
    %v1122 = vadd.f32 0.0, %v1121
    %v1123 = vpop.f32.mrf.mxu0
    %1124 = vmatprep.mubr.f32.mxu0 0.0
    %1125 = vmatmul.mubr.f32.gmra.mxu0 %v1028
    %v1126 = vpop.f32.mrf.mxu0
    %v1127 = vadd.f32 0.0, %v1126
    %v1128 = vpop.f32.mrf.mxu0
    %1129 = vmatprep.mubr.f32.mxu0 0.0
    %1130 = vmatmul.mubr.f32.gmra.mxu0 %v1029
    %v1131 = vpop.f32.mrf.mxu0
    %v1132 = vadd.f32 0.0, %v1131
    %v1133 = vpop.f32.mrf.mxu0
    %1134 = vmatprep.mubr.f32.mxu0 0.0
    %1135 = vmatmul.mubr.f32.gmra.mxu0 %v1030
    %v1136 = vpop.f32.mrf.mxu0
    %v1137 = vadd.f32 0.0, %v1136
    %v1138 = vpop.f32.mrf.mxu0
    %1139 = vmatprep.mubr.f32.mxu0 0.0
    %1140 = vmatmul.mubr.f32.gmra.mxu0 %v1031
    %v1141 = vpop.f32.mrf.mxu0
    %v1142 = vadd.f32 0.0, %v1141
    %v1143 = vpop.f32.mrf.mxu0
    %1144 = vmatprep.mubr.f32.mxu0 0.0
    %1145 = vmatmul.mubr.f32.gmra.mxu0 %v1032
    %v1146 = vpop.f32.mrf.mxu0
    %v1147 = vadd.f32 0.0, %v1146
    %v1148 = vpop.f32.mrf.mxu0
    %1149 = vmatprep.mubr.f32.mxu0 0.0
    %1150 = vmatmul.mubr.f32.gmra.mxu0 %v1033
    %v1151 = vpop.f32.mrf.mxu0
    %v1152 = vadd.f32 0.0, %v1151
    %v1153 = vpop.f32.mrf.mxu0
    %1154 = vmatprep.mubr.f32.mxu0 0.0
    %1155 = vmatmul.mubr.f32.gmra.mxu0 %v1034
    %v1156 = vpop.f32.mrf.mxu0
    %v1157 = vadd.f32 0.0, %v1156
    %v1158 = vpop.f32.mrf.mxu0
    %1159 = vmatprep.mubr.f32.mxu0 0.0
    %1160 = vmatmul.mubr.f32.gmra.mxu0 %v1035
    %v1161 = vpop.f32.mrf.mxu0
    %v1162 = vadd.f32 0.0, %v1161
    %v1163 = vpop.f32.mrf.mxu0
    %1164 = vmatprep.mubr.f32.mxu0 0.0
    %1165 = vmatmul.mubr.f32.gmra.mxu0 %v1036
    %v1166 = vpop.f32.mrf.mxu0
    %v1167 = vadd.f32 0.0, %v1166
    %v1168 = vpop.f32.mrf.mxu0
    %1169 = vmatprep.mubr.f32.mxu0 0.0
    %1170 = vmatmul.mubr.f32.gmra.mxu0 %v1037
    %v1171 = vpop.f32.mrf.mxu0
    %v1172 = vadd.f32 0.0, %v1171
    %v1173 = vpop.f32.mrf.mxu0
    %1174 = vmatprep.mubr.f32.mxu0 0.0
    %1175 = vmatmul.mubr.f32.gmra.mxu0 %v1038
    %v1176 = vpop.f32.mrf.mxu0
    %v1177 = vadd.f32 0.0, %v1176
    %v1178 = vpop.f32.mrf.mxu0
    %1179 = vmatprep.mubr.f32.mxu0 0.0
    %1180 = vmatmul.mubr.f32.gmra.mxu0 %v1039
    %v1181 = vpop.f32.mrf.mxu0
    %v1182 = vadd.f32 0.0, %v1181
    %v1183 = vpop.f32.mrf.mxu0
    %1184 = vdwg.mxu0
    %v1185 = vadd.f32 %v1007, %v1107
    %v1186 = vadd.f32 %v1008, %v1112
    %v1187 = vadd.f32 %v1009, %v1117
    %v1188 = vadd.f32 %v1010, %v1122
    %v1189 = vadd.f32 %v1011, %v1127
    %v1190 = vadd.f32 %v1012, %v1132
    %v1191 = vadd.f32 %v1013, %v1137
    %v1192 = vadd.f32 %v1014, %v1142
    %v1193 = vadd.f32 %v1015, %v1147
    %v1194 = vadd.f32 %v1016, %v1152
    %v1195 = vadd.f32 %v1017, %v1157
    %v1196 = vadd.f32 %v1018, %v1162
    %v1197 = vadd.f32 %v1019, %v1167
    %v1198 = vadd.f32 %v1020, %v1172
    %v1199 = vadd.f32 %v1021, %v1177
    %v1200 = vadd.f32 %v1022, %v1182
    %s1201 = scalar_lea.vmem [#allocation5], 384
    %v1202 = vld [vmem:[%s1201] sm:$0xff]
    %v1203 = vld [vmem:[%s1201 + $0x8] sm:$0xff]
    %v1204 = vld [vmem:[%s1201 + $0x10] sm:$0xff]
    %v1205 = vld [vmem:[%s1201 + $0x18] sm:$0xff]
    %v1206 = vld [vmem:[%s1201 + $0x20] sm:$0xff]
    %v1207 = vld [vmem:[%s1201 + $0x28] sm:$0xff]
    %v1208 = vld [vmem:[%s1201 + $0x30] sm:$0xff]
    %v1209 = vld [vmem:[%s1201 + $0x38] sm:$0xff]
    %v1210 = vld [vmem:[%s1201 + $0x40] sm:$0xff]
    %v1211 = vld [vmem:[%s1201 + $0x48] sm:$0xff]
    %v1212 = vld [vmem:[%s1201 + $0x50] sm:$0xff]
    %v1213 = vld [vmem:[%s1201 + $0x58] sm:$0xff]
    %v1214 = vld [vmem:[%s1201 + $0x60] sm:$0xff]
    %v1215 = vld [vmem:[%s1201 + $0x68] sm:$0xff]
    %v1216 = vld [vmem:[%s1201 + $0x70] sm:$0xff]
    %v1217 = vld [vmem:[%s1201 + $0x78] sm:$0xff]
    %1218 = vmatprep.subr.mxu0 0.0
    %1219 = vmatpush1.msra.mxu0 %v642
    %1220 = vmatprep.subr.mxu0 0.0
    %1221 = vmatpush1.msra.mxu0 %v637
    %1222 = vmatprep.subr.mxu0 0.0
    %1223 = vmatpush1.msra.mxu0 %v632
    %1224 = vmatprep.subr.mxu0 0.0
    %1225 = vmatpush1.msra.mxu0 %v627
    %1226 = vmatprep.subr.mxu0 0.0
    %1227 = vmatpush1.msra.mxu0 %v622
    %1228 = vmatprep.subr.mxu0 0.0
    %1229 = vmatpush1.msra.mxu0 %v617
    %1230 = vmatprep.subr.mxu0 0.0
    %1231 = vmatpush1.msra.mxu0 %v612
    %1232 = vmatprep.subr.mxu0 0.0
    %1233 = vmatpush1.msra.mxu0 %v607
    %1234 = vmatprep.subr.mxu0 0.0
    %1235 = vmatpush1.msra.mxu0 %v602
    %1236 = vmatprep.subr.mxu0 0.0
    %1237 = vmatpush1.msra.mxu0 %v597
    %1238 = vmatprep.subr.mxu0 0.0
    %1239 = vmatpush1.msra.mxu0 %v592
    %1240 = vmatprep.subr.mxu0 0.0
    %1241 = vmatpush1.msra.mxu0 %v587
    %1242 = vmatprep.subr.mxu0 0.0
    %1243 = vmatpush1.msra.mxu0 %v582
    %1244 = vmatprep.subr.mxu0 0.0
    %1245 = vmatpush1.msra.mxu0 %v577
    %1246 = vmatprep.subr.mxu0 0.0
    %1247 = vmatpush1.msra.mxu0 %v572
    %1248 = vmatprep.subr.mxu0 0.0
    %1249 = vmatpush1.msra.mxu0 %v567
    %1250 = vmatprep.subr.mxu0 0.0
    %1251 = vmatpush2.msra.mxu0 0.0
    %1252 = vmatprep.subr.mxu0 0.0
    %1253 = vmatpush2.msra.mxu0 0.0
    %1254 = vmatprep.subr.mxu0 0.0
    %1255 = vmatpush2.msra.mxu0 0.0
    %1256 = vmatprep.subr.mxu0 0.0
    %1257 = vmatpush2.msra.mxu0 0.0
    %1258 = vmatprep.subr.mxu0 0.0
    %1259 = vmatpush2.msra.mxu0 0.0
    %1260 = vmatprep.subr.mxu0 0.0
    %1261 = vmatpush2.msra.mxu0 0.0
    %1262 = vmatprep.subr.mxu0 0.0
    %1263 = vmatpush2.msra.mxu0 0.0
    %1264 = vmatprep.subr.mxu0 0.0
    %1265 = vmatpush2.msra.mxu0 0.0
    %1266 = vmatprep.subr.mxu0 0.0
    %1267 = vmatpush2.msra.mxu0 0.0
    %1268 = vmatprep.subr.mxu0 0.0
    %1269 = vmatpush2.msra.mxu0 0.0
    %1270 = vmatprep.subr.mxu0 0.0
    %1271 = vmatpush2.msra.mxu0 0.0
    %1272 = vmatprep.subr.mxu0 0.0
    %1273 = vmatpush2.msra.mxu0 0.0
    %1274 = vmatprep.subr.mxu0 0.0
    %1275 = vmatpush2.msra.mxu0 0.0
    %1276 = vmatprep.subr.mxu0 0.0
    %1277 = vmatpush2.msra.mxu0 0.0
    %1278 = vmatprep.subr.mxu0 0.0
    %1279 = vmatpush2.msra.mxu0 0.0
    %1280 = vmatprep.subr.mxu0 0.0
    %1281 = vmatpush2.msra.mxu0 0.0
    %1282 = vmatprep.mubr.f32.mxu0 0.0
    %1283 = vmatmul.mubr.f32.gmra.mxu0 %v1202
    %v1284 = vpop.f32.mrf.mxu0
    %v1285 = vadd.f32 0.0, %v1284
    %v1286 = vpop.f32.mrf.mxu0
    %1287 = vmatprep.mubr.f32.mxu0 0.0
    %1288 = vmatmul.mubr.f32.gmra.mxu0 %v1203
    %v1289 = vpop.f32.mrf.mxu0
    %v1290 = vadd.f32 0.0, %v1289
    %v1291 = vpop.f32.mrf.mxu0
    %1292 = vmatprep.mubr.f32.mxu0 0.0
    %1293 = vmatmul.mubr.f32.gmra.mxu0 %v1204
    %v1294 = vpop.f32.mrf.mxu0
    %v1295 = vadd.f32 0.0, %v1294
    %v1296 = vpop.f32.mrf.mxu0
    %1297 = vmatprep.mubr.f32.mxu0 0.0
    %1298 = vmatmul.mubr.f32.gmra.mxu0 %v1205
    %v1299 = vpop.f32.mrf.mxu0
    %v1300 = vadd.f32 0.0, %v1299
    %v1301 = vpop.f32.mrf.mxu0
    %1302 = vmatprep.mubr.f32.mxu0 0.0
    %1303 = vmatmul.mubr.f32.gmra.mxu0 %v1206
    %v1304 = vpop.f32.mrf.mxu0
    %v1305 = vadd.f32 0.0, %v1304
    %v1306 = vpop.f32.mrf.mxu0
    %1307 = vmatprep.mubr.f32.mxu0 0.0
    %1308 = vmatmul.mubr.f32.gmra.mxu0 %v1207
    %v1309 = vpop.f32.mrf.mxu0
    %v1310 = vadd.f32 0.0, %v1309
    %v1311 = vpop.f32.mrf.mxu0
    %1312 = vmatprep.mubr.f32.mxu0 0.0
    %1313 = vmatmul.mubr.f32.gmra.mxu0 %v1208
    %v1314 = vpop.f32.mrf.mxu0
    %v1315 = vadd.f32 0.0, %v1314
    %v1316 = vpop.f32.mrf.mxu0
    %1317 = vmatprep.mubr.f32.mxu0 0.0
    %1318 = vmatmul.mubr.f32.gmra.mxu0 %v1209
    %v1319 = vpop.f32.mrf.mxu0
    %v1320 = vadd.f32 0.0, %v1319
    %v1321 = vpop.f32.mrf.mxu0
    %1322 = vmatprep.mubr.f32.mxu0 0.0
    %1323 = vmatmul.mubr.f32.gmra.mxu0 %v1210
    %v1324 = vpop.f32.mrf.mxu0
    %v1325 = vadd.f32 0.0, %v1324
    %v1326 = vpop.f32.mrf.mxu0
    %1327 = vmatprep.mubr.f32.mxu0 0.0
    %1328 = vmatmul.mubr.f32.gmra.mxu0 %v1211
    %v1329 = vpop.f32.mrf.mxu0
    %v1330 = vadd.f32 0.0, %v1329
    %v1331 = vpop.f32.mrf.mxu0
    %1332 = vmatprep.mubr.f32.mxu0 0.0
    %1333 = vmatmul.mubr.f32.gmra.mxu0 %v1212
    %v1334 = vpop.f32.mrf.mxu0
    %v1335 = vadd.f32 0.0, %v1334
    %v1336 = vpop.f32.mrf.mxu0
    %1337 = vmatprep.mubr.f32.mxu0 0.0
    %1338 = vmatmul.mubr.f32.gmra.mxu0 %v1213
    %v1339 = vpop.f32.mrf.mxu0
    %v1340 = vadd.f32 0.0, %v1339
    %v1341 = vpop.f32.mrf.mxu0
    %1342 = vmatprep.mubr.f32.mxu0 0.0
    %1343 = vmatmul.mubr.f32.gmra.mxu0 %v1214
    %v1344 = vpop.f32.mrf.mxu0
    %v1345 = vadd.f32 0.0, %v1344
    %v1346 = vpop.f32.mrf.mxu0
    %1347 = vmatprep.mubr.f32.mxu0 0.0
    %1348 = vmatmul.mubr.f32.gmra.mxu0 %v1215
    %v1349 = vpop.f32.mrf.mxu0
    %v1350 = vadd.f32 0.0, %v1349
    %v1351 = vpop.f32.mrf.mxu0
    %1352 = vmatprep.mubr.f32.mxu0 0.0
    %1353 = vmatmul.mubr.f32.gmra.mxu0 %v1216
    %v1354 = vpop.f32.mrf.mxu0
    %v1355 = vadd.f32 0.0, %v1354
    %v1356 = vpop.f32.mrf.mxu0
    %1357 = vmatprep.mubr.f32.mxu0 0.0
    %1358 = vmatmul.mubr.f32.gmra.mxu0 %v1217
    %v1359 = vpop.f32.mrf.mxu0
    %v1360 = vadd.f32 0.0, %v1359
    %v1361 = vpop.f32.mrf.mxu0
    %1362 = vdwg.mxu0
    %v1363 = vadd.f32 %v1185, %v1285
    %v1364 = vadd.f32 %v1186, %v1290
    %v1365 = vadd.f32 %v1187, %v1295
    %v1366 = vadd.f32 %v1188, %v1300
    %v1367 = vadd.f32 %v1189, %v1305
    %v1368 = vadd.f32 %v1190, %v1310
    %v1369 = vadd.f32 %v1191, %v1315
    %v1370 = vadd.f32 %v1192, %v1320
    %v1371 = vadd.f32 %v1193, %v1325
    %v1372 = vadd.f32 %v1194, %v1330
    %v1373 = vadd.f32 %v1195, %v1335
    %v1374 = vadd.f32 %v1196, %v1340
    %v1375 = vadd.f32 %v1197, %v1345
    %v1376 = vadd.f32 %v1198, %v1350
    %v1377 = vadd.f32 %v1199, %v1355
    %v1378 = vadd.f32 %v1200, %v1360
    %v1379 = vmax.f32 %v1363, 0.0
    %v1380 = vmax.f32 %v1364, 0.0
    %v1381 = vmax.f32 %v1365, 0.0
    %v1382 = vmax.f32 %v1366, 0.0
    %v1383 = vmax.f32 %v1367, 0.0
    %v1384 = vmax.f32 %v1368, 0.0
    %v1385 = vmax.f32 %v1369, 0.0
    %v1386 = vmax.f32 %v1370, 0.0
    %v1387 = vmax.f32 %v1371, 0.0
    %v1388 = vmax.f32 %v1372, 0.0
    %v1389 = vmax.f32 %v1373, 0.0
    %v1390 = vmax.f32 %v1374, 0.0
    %v1391 = vmax.f32 %v1375, 0.0
    %v1392 = vmax.f32 %v1376, 0.0
    %v1393 = vmax.f32 %v1377, 0.0
    %v1394 = vmax.f32 %v1378, 0.0
    %v1395 = vld [vmem:[#allocation8] sm:$0xff]
    %v1396 = vld [vmem:[#allocation8 + $0x8] sm:$0xff]
    %v1397 = vld [vmem:[#allocation8 + $0x10] sm:$0xff]
    %v1398 = vld [vmem:[#allocation8 + $0x18] sm:$0xff]
    %v1399 = vld [vmem:[#allocation8 + $0x20] sm:$0xff]
    %v1400 = vld [vmem:[#allocation8 + $0x28] sm:$0xff]
    %v1401 = vld [vmem:[#allocation8 + $0x30] sm:$0xff]
    %v1402 = vld [vmem:[#allocation8 + $0x38] sm:$0xff]
    %v1403 = vld [vmem:[#allocation8 + $0x40] sm:$0xff]
    %v1404 = vld [vmem:[#allocation8 + $0x48] sm:$0xff]
    %v1405 = vld [vmem:[#allocation8 + $0x50] sm:$0xff]
    %v1406 = vld [vmem:[#allocation8 + $0x58] sm:$0xff]
    %v1407 = vld [vmem:[#allocation8 + $0x60] sm:$0xff]
    %v1408 = vld [vmem:[#allocation8 + $0x68] sm:$0xff]
    %v1409 = vld [vmem:[#allocation8 + $0x70] sm:$0xff]
    %v1410 = vld [vmem:[#allocation8 + $0x78] sm:$0xff]
    %v1411 = vld [vmem:[#allocation8 + $0x80] sm:$0xff]
    %v1412 = vld [vmem:[#allocation8 + $0x88] sm:$0xff]
    %v1413 = vld [vmem:[#allocation8 + $0x90] sm:$0xff]
    %v1414 = vld [vmem:[#allocation8 + $0x98] sm:$0xff]
    %v1415 = vld [vmem:[#allocation8 + $0xa0] sm:$0xff]
    %v1416 = vld [vmem:[#allocation8 + $0xa8] sm:$0xff]
    %v1417 = vld [vmem:[#allocation8 + $0xb0] sm:$0xff]
    %v1418 = vld [vmem:[#allocation8 + $0xb8] sm:$0xff]
    %v1419 = vld [vmem:[#allocation8 + $0xc0] sm:$0xff]
    %v1420 = vld [vmem:[#allocation8 + $0xc8] sm:$0xff]
    %v1421 = vld [vmem:[#allocation8 + $0xd0] sm:$0xff]
    %v1422 = vld [vmem:[#allocation8 + $0xd8] sm:$0xff]
    %v1423 = vld [vmem:[#allocation8 + $0xe0] sm:$0xff]
    %v1424 = vld [vmem:[#allocation8 + $0xe8] sm:$0xff]
    %v1425 = vld [vmem:[#allocation8 + $0xf0] sm:$0xff]
    %v1426 = vld [vmem:[#allocation8 + $0xf8] sm:$0xff]
    %v1427 = vld [vmem:[#allocation8 + $0x100] sm:$0xff]
    %v1428 = vld [vmem:[#allocation8 + $0x108] sm:$0xff]
    %v1429 = vld [vmem:[#allocation8 + $0x110] sm:$0xff]
    %v1430 = vld [vmem:[#allocation8 + $0x118] sm:$0xff]
    %v1431 = vld [vmem:[#allocation8 + $0x120] sm:$0xff]
    %v1432 = vld [vmem:[#allocation8 + $0x128] sm:$0xff]
    %v1433 = vld [vmem:[#allocation8 + $0x130] sm:$0xff]
    %v1434 = vld [vmem:[#allocation8 + $0x138] sm:$0xff]
    %v1435 = vld [vmem:[#allocation8 + $0x140] sm:$0xff]
    %v1436 = vld [vmem:[#allocation8 + $0x148] sm:$0xff]
    %v1437 = vld [vmem:[#allocation8 + $0x150] sm:$0xff]
    %v1438 = vld [vmem:[#allocation8 + $0x158] sm:$0xff]
    %v1439 = vld [vmem:[#allocation8 + $0x160] sm:$0xff]
    %v1440 = vld [vmem:[#allocation8 + $0x168] sm:$0xff]
    %v1441 = vld [vmem:[#allocation8 + $0x170] sm:$0xff]
    %v1442 = vld [vmem:[#allocation8 + $0x178] sm:$0xff]
    %v1443 = vld [vmem:[#allocation8 + $0x180] sm:$0xff]
    %v1444 = vld [vmem:[#allocation8 + $0x188] sm:$0xff]
    %v1445 = vld [vmem:[#allocation8 + $0x190] sm:$0xff]
    %v1446 = vld [vmem:[#allocation8 + $0x198] sm:$0xff]
    %v1447 = vld [vmem:[#allocation8 + $0x1a0] sm:$0xff]
    %v1448 = vld [vmem:[#allocation8 + $0x1a8] sm:$0xff]
    %v1449 = vld [vmem:[#allocation8 + $0x1b0] sm:$0xff]
    %v1450 = vld [vmem:[#allocation8 + $0x1b8] sm:$0xff]
    %v1451 = vld [vmem:[#allocation8 + $0x1c0] sm:$0xff]
    %v1452 = vld [vmem:[#allocation8 + $0x1c8] sm:$0xff]
    %v1453 = vld [vmem:[#allocation8 + $0x1d0] sm:$0xff]
    %v1454 = vld [vmem:[#allocation8 + $0x1d8] sm:$0xff]
    %v1455 = vld [vmem:[#allocation8 + $0x1e0] sm:$0xff]
    %v1456 = vld [vmem:[#allocation8 + $0x1e8] sm:$0xff]
    %v1457 = vld [vmem:[#allocation8 + $0x1f0] sm:$0xff]
    %v1458 = vld [vmem:[#allocation8 + $0x1f8] sm:$0xff]
    %v1459 = vld [vmem:[#allocation8 + $0x200] sm:$0xff]
    %v1460 = vld [vmem:[#allocation8 + $0x208] sm:$0xff]
    %v1461 = vld [vmem:[#allocation8 + $0x210] sm:$0xff]
    %v1462 = vld [vmem:[#allocation8 + $0x218] sm:$0xff]
    %v1463 = vld [vmem:[#allocation8 + $0x220] sm:$0xff]
    %v1464 = vld [vmem:[#allocation8 + $0x228] sm:$0xff]
    %v1465 = vld [vmem:[#allocation8 + $0x230] sm:$0xff]
    %v1466 = vld [vmem:[#allocation8 + $0x238] sm:$0xff]
    %v1467 = vld [vmem:[#allocation8 + $0x240] sm:$0xff]
    %v1468 = vld [vmem:[#allocation8 + $0x248] sm:$0xff]
    %v1469 = vld [vmem:[#allocation8 + $0x250] sm:$0xff]
    %v1470 = vld [vmem:[#allocation8 + $0x258] sm:$0xff]
    %v1471 = vld [vmem:[#allocation8 + $0x260] sm:$0xff]
    %v1472 = vld [vmem:[#allocation8 + $0x268] sm:$0xff]
    %v1473 = vld [vmem:[#allocation8 + $0x270] sm:$0xff]
    %v1474 = vld [vmem:[#allocation8 + $0x278] sm:$0xff]
    %1475 = vmatprep.subr.mxu0 %v1471
    %1476 = vmatpush1.msra.mxu0 %v1470
    %1477 = vmatprep.subr.mxu0 %v1466
    %1478 = vmatpush1.msra.mxu0 %v1465
    %1479 = vmatprep.subr.mxu0 %v1461
    %1480 = vmatpush1.msra.mxu0 %v1460
    %1481 = vmatprep.subr.mxu0 %v1456
    %1482 = vmatpush1.msra.mxu0 %v1455
    %1483 = vmatprep.subr.mxu0 %v1451
    %1484 = vmatpush1.msra.mxu0 %v1450
    %1485 = vmatprep.subr.mxu0 %v1446
    %1486 = vmatpush1.msra.mxu0 %v1445
    %1487 = vmatprep.subr.mxu0 %v1441
    %1488 = vmatpush1.msra.mxu0 %v1440
    %1489 = vmatprep.subr.mxu0 %v1436
    %1490 = vmatpush1.msra.mxu0 %v1435
    %1491 = vmatprep.subr.mxu0 %v1431
    %1492 = vmatpush1.msra.mxu0 %v1430
    %1493 = vmatprep.subr.mxu0 %v1426
    %1494 = vmatpush1.msra.mxu0 %v1425
    %1495 = vmatprep.subr.mxu0 %v1421
    %1496 = vmatpush1.msra.mxu0 %v1420
    %1497 = vmatprep.subr.mxu0 %v1416
    %1498 = vmatpush1.msra.mxu0 %v1415
    %1499 = vmatprep.subr.mxu0 %v1411
    %1500 = vmatpush1.msra.mxu0 %v1410
    %1501 = vmatprep.subr.mxu0 %v1406
    %1502 = vmatpush1.msra.mxu0 %v1405
    %1503 = vmatprep.subr.mxu0 %v1401
    %1504 = vmatpush1.msra.mxu0 %v1400
    %1505 = vmatprep.subr.mxu0 %v1396
    %1506 = vmatpush1.msra.mxu0 %v1395
    %1507 = vmatprep.subr.mxu0 0.0
    %1508 = vmatpush2.msra.mxu0 0.0
    %1509 = vmatprep.subr.mxu0 0.0
    %1510 = vmatpush2.msra.mxu0 0.0
    %1511 = vmatprep.subr.mxu0 0.0
    %1512 = vmatpush2.msra.mxu0 0.0
    %1513 = vmatprep.subr.mxu0 0.0
    %1514 = vmatpush2.msra.mxu0 0.0
    %1515 = vmatprep.subr.mxu0 0.0
    %1516 = vmatpush2.msra.mxu0 0.0
    %1517 = vmatprep.subr.mxu0 0.0
    %1518 = vmatpush2.msra.mxu0 0.0
    %1519 = vmatprep.subr.mxu0 0.0
    %1520 = vmatpush2.msra.mxu0 0.0
    %1521 = vmatprep.subr.mxu0 0.0
    %1522 = vmatpush2.msra.mxu0 0.0
    %1523 = vmatprep.subr.mxu0 0.0
    %1524 = vmatpush2.msra.mxu0 0.0
    %1525 = vmatprep.subr.mxu0 0.0
    %1526 = vmatpush2.msra.mxu0 0.0
    %1527 = vmatprep.subr.mxu0 0.0
    %1528 = vmatpush2.msra.mxu0 0.0
    %1529 = vmatprep.subr.mxu0 0.0
    %1530 = vmatpush2.msra.mxu0 0.0
    %1531 = vmatprep.subr.mxu0 0.0
    %1532 = vmatpush2.msra.mxu0 0.0
    %1533 = vmatprep.subr.mxu0 0.0
    %1534 = vmatpush2.msra.mxu0 0.0
    %1535 = vmatprep.subr.mxu0 0.0
    %1536 = vmatpush2.msra.mxu0 0.0
    %1537 = vmatprep.subr.mxu0 0.0
    %1538 = vmatpush2.msra.mxu0 0.0
    %1539 = vmatprep.mubr.f32.mxu0 0.0
    %1540 = vmatmul.mubr.f32.gmra.mxu0 %v1379
    %v1541 = vpop.f32.mrf.mxu0
    %v1542 = vadd.f32 0.0, %v1541
    %v1543 = vpop.f32.mrf.mxu0
    %v1544 = vadd.f32 0.0, %v1543
    %1545 = vmatprep.mubr.f32.mxu0 0.0
    %1546 = vmatmul.mubr.f32.gmra.mxu0 %v1380
    %v1547 = vpop.f32.mrf.mxu0
    %v1548 = vadd.f32 0.0, %v1547
    %v1549 = vpop.f32.mrf.mxu0
    %v1550 = vadd.f32 0.0, %v1549
    %1551 = vmatprep.mubr.f32.mxu0 0.0
    %1552 = vmatmul.mubr.f32.gmra.mxu0 %v1381
    %v1553 = vpop.f32.mrf.mxu0
    %v1554 = vadd.f32 0.0, %v1553
    %v1555 = vpop.f32.mrf.mxu0
    %v1556 = vadd.f32 0.0, %v1555
    %1557 = vmatprep.mubr.f32.mxu0 0.0
    %1558 = vmatmul.mubr.f32.gmra.mxu0 %v1382
    %v1559 = vpop.f32.mrf.mxu0
    %v1560 = vadd.f32 0.0, %v1559
    %v1561 = vpop.f32.mrf.mxu0
    %v1562 = vadd.f32 0.0, %v1561
    %1563 = vmatprep.mubr.f32.mxu0 0.0
    %1564 = vmatmul.mubr.f32.gmra.mxu0 %v1383
    %v1565 = vpop.f32.mrf.mxu0
    %v1566 = vadd.f32 0.0, %v1565
    %v1567 = vpop.f32.mrf.mxu0
    %v1568 = vadd.f32 0.0, %v1567
    %1569 = vmatprep.mubr.f32.mxu0 0.0
    %1570 = vmatmul.mubr.f32.gmra.mxu0 %v1384
    %v1571 = vpop.f32.mrf.mxu0
    %v1572 = vadd.f32 0.0, %v1571
    %v1573 = vpop.f32.mrf.mxu0
    %v1574 = vadd.f32 0.0, %v1573
    %1575 = vmatprep.mubr.f32.mxu0 0.0
    %1576 = vmatmul.mubr.f32.gmra.mxu0 %v1385
    %v1577 = vpop.f32.mrf.mxu0
    %v1578 = vadd.f32 0.0, %v1577
    %v1579 = vpop.f32.mrf.mxu0
    %v1580 = vadd.f32 0.0, %v1579
    %1581 = vmatprep.mubr.f32.mxu0 0.0
    %1582 = vmatmul.mubr.f32.gmra.mxu0 %v1386
    %v1583 = vpop.f32.mrf.mxu0
    %v1584 = vadd.f32 0.0, %v1583
    %v1585 = vpop.f32.mrf.mxu0
    %v1586 = vadd.f32 0.0, %v1585
    %1587 = vmatprep.mubr.f32.mxu0 0.0
    %1588 = vmatmul.mubr.f32.gmra.mxu0 %v1387
    %v1589 = vpop.f32.mrf.mxu0
    %v1590 = vadd.f32 0.0, %v1589
    %v1591 = vpop.f32.mrf.mxu0
    %v1592 = vadd.f32 0.0, %v1591
    %1593 = vmatprep.mubr.f32.mxu0 0.0
    %1594 = vmatmul.mubr.f32.gmra.mxu0 %v1388
    %v1595 = vpop.f32.mrf.mxu0
    %v1596 = vadd.f32 0.0, %v1595
    %v1597 = vpop.f32.mrf.mxu0
    %v1598 = vadd.f32 0.0, %v1597
    %1599 = vmatprep.mubr.f32.mxu0 0.0
    %1600 = vmatmul.mubr.f32.gmra.mxu0 %v1389
    %v1601 = vpop.f32.mrf.mxu0
    %v1602 = vadd.f32 0.0, %v1601
    %v1603 = vpop.f32.mrf.mxu0
    %v1604 = vadd.f32 0.0, %v1603
    %1605 = vmatprep.mubr.f32.mxu0 0.0
    %1606 = vmatmul.mubr.f32.gmra.mxu0 %v1390
    %v1607 = vpop.f32.mrf.mxu0
    %v1608 = vadd.f32 0.0, %v1607
    %v1609 = vpop.f32.mrf.mxu0
    %v1610 = vadd.f32 0.0, %v1609
    %1611 = vmatprep.mubr.f32.mxu0 0.0
    %1612 = vmatmul.mubr.f32.gmra.mxu0 %v1391
    %v1613 = vpop.f32.mrf.mxu0
    %v1614 = vadd.f32 0.0, %v1613
    %v1615 = vpop.f32.mrf.mxu0
    %v1616 = vadd.f32 0.0, %v1615
    %1617 = vmatprep.mubr.f32.mxu0 0.0
    %1618 = vmatmul.mubr.f32.gmra.mxu0 %v1392
    %v1619 = vpop.f32.mrf.mxu0
    %v1620 = vadd.f32 0.0, %v1619
    %v1621 = vpop.f32.mrf.mxu0
    %v1622 = vadd.f32 0.0, %v1621
    %1623 = vmatprep.mubr.f32.mxu0 0.0
    %1624 = vmatmul.mubr.f32.gmra.mxu0 %v1393
    %v1625 = vpop.f32.mrf.mxu0
    %v1626 = vadd.f32 0.0, %v1625
    %v1627 = vpop.f32.mrf.mxu0
    %v1628 = vadd.f32 0.0, %v1627
    %1629 = vmatprep.mubr.f32.mxu0 0.0
    %1630 = vmatmul.mubr.f32.gmra.mxu0 %v1394
    %v1631 = vpop.f32.mrf.mxu0
    %v1632 = vadd.f32 0.0, %v1631
    %v1633 = vpop.f32.mrf.mxu0
    %v1634 = vadd.f32 0.0, %v1633
    %1635 = vdwg.mxu0
    %1636 = vmatprep.subr.mxu0 %v1473
    %1637 = vmatpush1.msra.mxu0 %v1472
    %1638 = vmatprep.subr.mxu0 %v1468
    %1639 = vmatpush1.msra.mxu0 %v1467
    %1640 = vmatprep.subr.mxu0 %v1463
    %1641 = vmatpush1.msra.mxu0 %v1462
    %1642 = vmatprep.subr.mxu0 %v1458
    %1643 = vmatpush1.msra.mxu0 %v1457
    %1644 = vmatprep.subr.mxu0 %v1453
    %1645 = vmatpush1.msra.mxu0 %v1452
    %1646 = vmatprep.subr.mxu0 %v1448
    %1647 = vmatpush1.msra.mxu0 %v1447
    %1648 = vmatprep.subr.mxu0 %v1443
    %1649 = vmatpush1.msra.mxu0 %v1442
    %1650 = vmatprep.subr.mxu0 %v1438
    %1651 = vmatpush1.msra.mxu0 %v1437
    %1652 = vmatprep.subr.mxu0 %v1433
    %1653 = vmatpush1.msra.mxu0 %v1432
    %1654 = vmatprep.subr.mxu0 %v1428
    %1655 = vmatpush1.msra.mxu0 %v1427
    %1656 = vmatprep.subr.mxu0 %v1423
    %1657 = vmatpush1.msra.mxu0 %v1422
    %1658 = vmatprep.subr.mxu0 %v1418
    %1659 = vmatpush1.msra.mxu0 %v1417
    %1660 = vmatprep.subr.mxu0 %v1413
    %1661 = vmatpush1.msra.mxu0 %v1412
    %1662 = vmatprep.subr.mxu0 %v1408
    %1663 = vmatpush1.msra.mxu0 %v1407
    %1664 = vmatprep.subr.mxu0 %v1403
    %1665 = vmatpush1.msra.mxu0 %v1402
    %1666 = vmatprep.subr.mxu0 %v1398
    %1667 = vmatpush1.msra.mxu0 %v1397
    %1668 = vmatprep.subr.mxu0 0.0
    %1669 = vmatpush2.msra.mxu0 0.0
    %1670 = vmatprep.subr.mxu0 0.0
    %1671 = vmatpush2.msra.mxu0 0.0
    %1672 = vmatprep.subr.mxu0 0.0
    %1673 = vmatpush2.msra.mxu0 0.0
    %1674 = vmatprep.subr.mxu0 0.0
    %1675 = vmatpush2.msra.mxu0 0.0
    %1676 = vmatprep.subr.mxu0 0.0
    %1677 = vmatpush2.msra.mxu0 0.0
    %1678 = vmatprep.subr.mxu0 0.0
    %1679 = vmatpush2.msra.mxu0 0.0
    %1680 = vmatprep.subr.mxu0 0.0
    %1681 = vmatpush2.msra.mxu0 0.0
    %1682 = vmatprep.subr.mxu0 0.0
    %1683 = vmatpush2.msra.mxu0 0.0
    %1684 = vmatprep.subr.mxu0 0.0
    %1685 = vmatpush2.msra.mxu0 0.0
    %1686 = vmatprep.subr.mxu0 0.0
    %1687 = vmatpush2.msra.mxu0 0.0
    %1688 = vmatprep.subr.mxu0 0.0
    %1689 = vmatpush2.msra.mxu0 0.0
    %1690 = vmatprep.subr.mxu0 0.0
    %1691 = vmatpush2.msra.mxu0 0.0
    %1692 = vmatprep.subr.mxu0 0.0
    %1693 = vmatpush2.msra.mxu0 0.0
    %1694 = vmatprep.subr.mxu0 0.0
    %1695 = vmatpush2.msra.mxu0 0.0
    %1696 = vmatprep.subr.mxu0 0.0
    %1697 = vmatpush2.msra.mxu0 0.0
    %1698 = vmatprep.subr.mxu0 0.0
    %1699 = vmatpush2.msra.mxu0 0.0
    %1700 = vmatprep.mubr.f32.mxu0 0.0
    %1701 = vmatmul.mubr.f32.gmra.mxu0 %v1379
    %v1702 = vpop.f32.mrf.mxu0
    %v1703 = vadd.f32 0.0, %v1702
    %v1704 = vpop.f32.mrf.mxu0
    %v1705 = vadd.f32 0.0, %v1704
    %1706 = vmatprep.mubr.f32.mxu0 0.0
    %1707 = vmatmul.mubr.f32.gmra.mxu0 %v1380
    %v1708 = vpop.f32.mrf.mxu0
    %v1709 = vadd.f32 0.0, %v1708
    %v1710 = vpop.f32.mrf.mxu0
    %v1711 = vadd.f32 0.0, %v1710
    %1712 = vmatprep.mubr.f32.mxu0 0.0
    %1713 = vmatmul.mubr.f32.gmra.mxu0 %v1381
    %v1714 = vpop.f32.mrf.mxu0
    %v1715 = vadd.f32 0.0, %v1714
    %v1716 = vpop.f32.mrf.mxu0
    %v1717 = vadd.f32 0.0, %v1716
    %1718 = vmatprep.mubr.f32.mxu0 0.0
    %1719 = vmatmul.mubr.f32.gmra.mxu0 %v1382
    %v1720 = vpop.f32.mrf.mxu0
    %v1721 = vadd.f32 0.0, %v1720
    %v1722 = vpop.f32.mrf.mxu0
    %v1723 = vadd.f32 0.0, %v1722
    %1724 = vmatprep.mubr.f32.mxu0 0.0
    %1725 = vmatmul.mubr.f32.gmra.mxu0 %v1383
    %v1726 = vpop.f32.mrf.mxu0
    %v1727 = vadd.f32 0.0, %v1726
    %v1728 = vpop.f32.mrf.mxu0
    %v1729 = vadd.f32 0.0, %v1728
    %1730 = vmatprep.mubr.f32.mxu0 0.0
    %1731 = vmatmul.mubr.f32.gmra.mxu0 %v1384
    %v1732 = vpop.f32.mrf.mxu0
    %v1733 = vadd.f32 0.0, %v1732
    %v1734 = vpop.f32.mrf.mxu0
    %v1735 = vadd.f32 0.0, %v1734
    %1736 = vmatprep.mubr.f32.mxu0 0.0
    %1737 = vmatmul.mubr.f32.gmra.mxu0 %v1385
    %v1738 = vpop.f32.mrf.mxu0
    %v1739 = vadd.f32 0.0, %v1738
    %v1740 = vpop.f32.mrf.mxu0
    %v1741 = vadd.f32 0.0, %v1740
    %1742 = vmatprep.mubr.f32.mxu0 0.0
    %1743 = vmatmul.mubr.f32.gmra.mxu0 %v1386
    %v1744 = vpop.f32.mrf.mxu0
    %v1745 = vadd.f32 0.0, %v1744
    %v1746 = vpop.f32.mrf.mxu0
    %v1747 = vadd.f32 0.0, %v1746
    %1748 = vmatprep.mubr.f32.mxu0 0.0
    %1749 = vmatmul.mubr.f32.gmra.mxu0 %v1387
    %v1750 = vpop.f32.mrf.mxu0
    %v1751 = vadd.f32 0.0, %v1750
    %v1752 = vpop.f32.mrf.mxu0
    %v1753 = vadd.f32 0.0, %v1752
    %1754 = vmatprep.mubr.f32.mxu0 0.0
    %1755 = vmatmul.mubr.f32.gmra.mxu0 %v1388
    %v1756 = vpop.f32.mrf.mxu0
    %v1757 = vadd.f32 0.0, %v1756
    %v1758 = vpop.f32.mrf.mxu0
    %v1759 = vadd.f32 0.0, %v1758
    %1760 = vmatprep.mubr.f32.mxu0 0.0
    %1761 = vmatmul.mubr.f32.gmra.mxu0 %v1389
    %v1762 = vpop.f32.mrf.mxu0
    %v1763 = vadd.f32 0.0, %v1762
    %v1764 = vpop.f32.mrf.mxu0
    %v1765 = vadd.f32 0.0, %v1764
    %1766 = vmatprep.mubr.f32.mxu0 0.0
    %1767 = vmatmul.mubr.f32.gmra.mxu0 %v1390
    %v1768 = vpop.f32.mrf.mxu0
    %v1769 = vadd.f32 0.0, %v1768
    %v1770 = vpop.f32.mrf.mxu0
    %v1771 = vadd.f32 0.0, %v1770
    %1772 = vmatprep.mubr.f32.mxu0 0.0
    %1773 = vmatmul.mubr.f32.gmra.mxu0 %v1391
    %v1774 = vpop.f32.mrf.mxu0
    %v1775 = vadd.f32 0.0, %v1774
    %v1776 = vpop.f32.mrf.mxu0
    %v1777 = vadd.f32 0.0, %v1776
    %1778 = vmatprep.mubr.f32.mxu0 0.0
    %1779 = vmatmul.mubr.f32.gmra.mxu0 %v1392
    %v1780 = vpop.f32.mrf.mxu0
    %v1781 = vadd.f32 0.0, %v1780
    %v1782 = vpop.f32.mrf.mxu0
    %v1783 = vadd.f32 0.0, %v1782
    %1784 = vmatprep.mubr.f32.mxu0 0.0
    %1785 = vmatmul.mubr.f32.gmra.mxu0 %v1393
    %v1786 = vpop.f32.mrf.mxu0
    %v1787 = vadd.f32 0.0, %v1786
    %v1788 = vpop.f32.mrf.mxu0
    %v1789 = vadd.f32 0.0, %v1788
    %1790 = vmatprep.mubr.f32.mxu0 0.0
    %1791 = vmatmul.mubr.f32.gmra.mxu0 %v1394
    %v1792 = vpop.f32.mrf.mxu0
    %v1793 = vadd.f32 0.0, %v1792
    %v1794 = vpop.f32.mrf.mxu0
    %v1795 = vadd.f32 0.0, %v1794
    %1796 = vdwg.mxu0
    %1797 = vmatprep.subr.mxu0 0.0
    %1798 = vmatpush1.msra.mxu0 %v1474
    %1799 = vmatprep.subr.mxu0 0.0
    %1800 = vmatpush1.msra.mxu0 %v1469
    %1801 = vmatprep.subr.mxu0 0.0
    %1802 = vmatpush1.msra.mxu0 %v1464
    %1803 = vmatprep.subr.mxu0 0.0
    %1804 = vmatpush1.msra.mxu0 %v1459
    %1805 = vmatprep.subr.mxu0 0.0
    %1806 = vmatpush1.msra.mxu0 %v1454
    %1807 = vmatprep.subr.mxu0 0.0
    %1808 = vmatpush1.msra.mxu0 %v1449
    %1809 = vmatprep.subr.mxu0 0.0
    %1810 = vmatpush1.msra.mxu0 %v1444
    %1811 = vmatprep.subr.mxu0 0.0
    %1812 = vmatpush1.msra.mxu0 %v1439
    %1813 = vmatprep.subr.mxu0 0.0
    %1814 = vmatpush1.msra.mxu0 %v1434
    %1815 = vmatprep.subr.mxu0 0.0
    %1816 = vmatpush1.msra.mxu0 %v1429
    %1817 = vmatprep.subr.mxu0 0.0
    %1818 = vmatpush1.msra.mxu0 %v1424
    %1819 = vmatprep.subr.mxu0 0.0
    %1820 = vmatpush1.msra.mxu0 %v1419
    %1821 = vmatprep.subr.mxu0 0.0
    %1822 = vmatpush1.msra.mxu0 %v1414
    %1823 = vmatprep.subr.mxu0 0.0
    %1824 = vmatpush1.msra.mxu0 %v1409
    %1825 = vmatprep.subr.mxu0 0.0
    %1826 = vmatpush1.msra.mxu0 %v1404
    %1827 = vmatprep.subr.mxu0 0.0
    %1828 = vmatpush1.msra.mxu0 %v1399
    %1829 = vmatprep.subr.mxu0 0.0
    %1830 = vmatpush2.msra.mxu0 0.0
    %1831 = vmatprep.subr.mxu0 0.0
    %1832 = vmatpush2.msra.mxu0 0.0
    %1833 = vmatprep.subr.mxu0 0.0
    %1834 = vmatpush2.msra.mxu0 0.0
    %1835 = vmatprep.subr.mxu0 0.0
    %1836 = vmatpush2.msra.mxu0 0.0
    %1837 = vmatprep.subr.mxu0 0.0
    %1838 = vmatpush2.msra.mxu0 0.0
    %1839 = vmatprep.subr.mxu0 0.0
    %1840 = vmatpush2.msra.mxu0 0.0
    %1841 = vmatprep.subr.mxu0 0.0
    %1842 = vmatpush2.msra.mxu0 0.0
    %1843 = vmatprep.subr.mxu0 0.0
    %1844 = vmatpush2.msra.mxu0 0.0
    %1845 = vmatprep.subr.mxu0 0.0
    %1846 = vmatpush2.msra.mxu0 0.0
    %1847 = vmatprep.subr.mxu0 0.0
    %1848 = vmatpush2.msra.mxu0 0.0
    %1849 = vmatprep.subr.mxu0 0.0
    %1850 = vmatpush2.msra.mxu0 0.0
    %1851 = vmatprep.subr.mxu0 0.0
    %1852 = vmatpush2.msra.mxu0 0.0
    %1853 = vmatprep.subr.mxu0 0.0
    %1854 = vmatpush2.msra.mxu0 0.0
    %1855 = vmatprep.subr.mxu0 0.0
    %1856 = vmatpush2.msra.mxu0 0.0
    %1857 = vmatprep.subr.mxu0 0.0
    %1858 = vmatpush2.msra.mxu0 0.0
    %1859 = vmatprep.subr.mxu0 0.0
    %1860 = vmatpush2.msra.mxu0 0.0
    %1861 = vmatprep.mubr.f32.mxu0 0.0
    %1862 = vmatmul.mubr.f32.gmra.mxu0 %v1379
    %v1863 = vpop.f32.mrf.mxu0
    %v1864 = vadd.f32 0.0, %v1863
    %v1865 = vpop.f32.mrf.mxu0
    %1866 = vmatprep.mubr.f32.mxu0 0.0
    %1867 = vmatmul.mubr.f32.gmra.mxu0 %v1380
    %v1868 = vpop.f32.mrf.mxu0
    %v1869 = vadd.f32 0.0, %v1868
    %v1870 = vpop.f32.mrf.mxu0
    %1871 = vmatprep.mubr.f32.mxu0 0.0
    %1872 = vmatmul.mubr.f32.gmra.mxu0 %v1381
    %v1873 = vpop.f32.mrf.mxu0
    %v1874 = vadd.f32 0.0, %v1873
    %v1875 = vpop.f32.mrf.mxu0
    %1876 = vmatprep.mubr.f32.mxu0 0.0
    %1877 = vmatmul.mubr.f32.gmra.mxu0 %v1382
    %v1878 = vpop.f32.mrf.mxu0
    %v1879 = vadd.f32 0.0, %v1878
    %v1880 = vpop.f32.mrf.mxu0
    %1881 = vmatprep.mubr.f32.mxu0 0.0
    %1882 = vmatmul.mubr.f32.gmra.mxu0 %v1383
    %v1883 = vpop.f32.mrf.mxu0
    %v1884 = vadd.f32 0.0, %v1883
    %v1885 = vpop.f32.mrf.mxu0
    %1886 = vmatprep.mubr.f32.mxu0 0.0
    %1887 = vmatmul.mubr.f32.gmra.mxu0 %v1384
    %v1888 = vpop.f32.mrf.mxu0
    %v1889 = vadd.f32 0.0, %v1888
    %v1890 = vpop.f32.mrf.mxu0
    %1891 = vmatprep.mubr.f32.mxu0 0.0
    %1892 = vmatmul.mubr.f32.gmra.mxu0 %v1385
    %v1893 = vpop.f32.mrf.mxu0
    %v1894 = vadd.f32 0.0, %v1893
    %v1895 = vpop.f32.mrf.mxu0
    %1896 = vmatprep.mubr.f32.mxu0 0.0
    %1897 = vmatmul.mubr.f32.gmra.mxu0 %v1386
    %v1898 = vpop.f32.mrf.mxu0
    %v1899 = vadd.f32 0.0, %v1898
    %v1900 = vpop.f32.mrf.mxu0
    %1901 = vmatprep.mubr.f32.mxu0 0.0
    %1902 = vmatmul.mubr.f32.gmra.mxu0 %v1387
    %v1903 = vpop.f32.mrf.mxu0
    %v1904 = vadd.f32 0.0, %v1903
    %v1905 = vpop.f32.mrf.mxu0
    %1906 = vmatprep.mubr.f32.mxu0 0.0
    %1907 = vmatmul.mubr.f32.gmra.mxu0 %v1388
    %v1908 = vpop.f32.mrf.mxu0
    %v1909 = vadd.f32 0.0, %v1908
    %v1910 = vpop.f32.mrf.mxu0
    %1911 = vmatprep.mubr.f32.mxu0 0.0
    %1912 = vmatmul.mubr.f32.gmra.mxu0 %v1389
    %v1913 = vpop.f32.mrf.mxu0
    %v1914 = vadd.f32 0.0, %v1913
    %v1915 = vpop.f32.mrf.mxu0
    %1916 = vmatprep.mubr.f32.mxu0 0.0
    %1917 = vmatmul.mubr.f32.gmra.mxu0 %v1390
    %v1918 = vpop.f32.mrf.mxu0
    %v1919 = vadd.f32 0.0, %v1918
    %v1920 = vpop.f32.mrf.mxu0
    %1921 = vmatprep.mubr.f32.mxu0 0.0
    %1922 = vmatmul.mubr.f32.gmra.mxu0 %v1391
    %v1923 = vpop.f32.mrf.mxu0
    %v1924 = vadd.f32 0.0, %v1923
    %v1925 = vpop.f32.mrf.mxu0
    %1926 = vmatprep.mubr.f32.mxu0 0.0
    %1927 = vmatmul.mubr.f32.gmra.mxu0 %v1392
    %v1928 = vpop.f32.mrf.mxu0
    %v1929 = vadd.f32 0.0, %v1928
    %v1930 = vpop.f32.mrf.mxu0
    %1931 = vmatprep.mubr.f32.mxu0 0.0
    %1932 = vmatmul.mubr.f32.gmra.mxu0 %v1393
    %v1933 = vpop.f32.mrf.mxu0
    %v1934 = vadd.f32 0.0, %v1933
    %v1935 = vpop.f32.mrf.mxu0
    %1936 = vmatprep.mubr.f32.mxu0 0.0
    %1937 = vmatmul.mubr.f32.gmra.mxu0 %v1394
    %v1938 = vpop.f32.mrf.mxu0
    %v1939 = vadd.f32 0.0, %v1938
    %v1940 = vpop.f32.mrf.mxu0
    %1941 = vdwg.mxu0
    %v1942 = vld [vmem:[%s5] sm:$0x1]
    %v1944 = vlaneseq
    %v1945 = vshrl.u32 %v1944, 7
    %v1946 = vsub.s32 0, %v1945
    %v1947 = vrot.slane %v1942, %v1946
    %v1949 = vadd.f32 %v1542, %v1947
    %v1950 = vadd.f32 %v1548, %v1947
    %v1951 = vadd.f32 %v1554, %v1947
    %v1952 = vadd.f32 %v1560, %v1947
    %v1953 = vadd.f32 %v1566, %v1947
    %v1954 = vadd.f32 %v1572, %v1947
    %v1955 = vadd.f32 %v1578, %v1947
    %v1956 = vadd.f32 %v1584, %v1947
    %v1957 = vadd.f32 %v1590, %v1947
    %v1958 = vadd.f32 %v1596, %v1947
    %v1959 = vadd.f32 %v1602, %v1947
    %v1960 = vadd.f32 %v1608, %v1947
    %v1961 = vadd.f32 %v1614, %v1947
    %v1962 = vadd.f32 %v1620, %v1947
    %v1963 = vadd.f32 %v1626, %v1947
    %v1964 = vadd.f32 %v1632, %v1947
    %1965 = vmatprep.subr.mxu0 0.0
    %1966 = vmatpush1.msra.mxu0 %v1634
    %1967 = vmatprep.subr.mxu0 0.0
    %1968 = vmatpush1.msra.mxu0 %v1628
    %1969 = vmatprep.subr.mxu0 0.0
    %1970 = vmatpush1.msra.mxu0 %v1622
    %1971 = vmatprep.subr.mxu0 0.0
    %1972 = vmatpush1.msra.mxu0 %v1616
    %1973 = vmatprep.subr.mxu0 0.0
    %1974 = vmatpush1.msra.mxu0 %v1610
    %1975 = vmatprep.subr.mxu0 0.0
    %1976 = vmatpush1.msra.mxu0 %v1604
    %1977 = vmatprep.subr.mxu0 0.0
    %1978 = vmatpush1.msra.mxu0 %v1598
    %1979 = vmatprep.subr.mxu0 0.0
    %1980 = vmatpush1.msra.mxu0 %v1592
    %1981 = vmatprep.subr.mxu0 0.0
    %1982 = vmatpush1.msra.mxu0 %v1586
    %1983 = vmatprep.subr.mxu0 0.0
    %1984 = vmatpush1.msra.mxu0 %v1580
    %1985 = vmatprep.subr.mxu0 0.0
    %1986 = vmatpush1.msra.mxu0 %v1574
    %1987 = vmatprep.subr.mxu0 0.0
    %1988 = vmatpush1.msra.mxu0 %v1568
    %1989 = vmatprep.subr.mxu0 0.0
    %1990 = vmatpush1.msra.mxu0 %v1562
    %1991 = vmatprep.subr.mxu0 0.0
    %1992 = vmatpush1.msra.mxu0 %v1556
    %1993 = vmatprep.subr.mxu0 0.0
    %1994 = vmatpush1.msra.mxu0 %v1550
    %1995 = vmatprep.subr.mxu0 0.0
    %1996 = vmatpush1.msra.mxu0 %v1544
    %1997 = vmatprep.subr.mxu0 0.0
    %1998 = vmatpush2.msra.mxu0 0.0
    %1999 = vmatprep.subr.mxu0 0.0
    %2000 = vmatpush2.msra.mxu0 0.0
    %2001 = vmatprep.subr.mxu0 0.0
    %2002 = vmatpush2.msra.mxu0 0.0
    %2003 = vmatprep.subr.mxu0 0.0
    %2004 = vmatpush2.msra.mxu0 0.0
    %2005 = vmatprep.subr.mxu0 0.0
    %2006 = vmatpush2.msra.mxu0 0.0
    %2007 = vmatprep.subr.mxu0 0.0
    %2008 = vmatpush2.msra.mxu0 0.0
    %2009 = vmatprep.subr.mxu0 0.0
    %2010 = vmatpush2.msra.mxu0 0.0
    %2011 = vmatprep.subr.mxu0 0.0
    %2012 = vmatpush2.msra.mxu0 0.0
    %2013 = vmatprep.subr.mxu0 0.0
    %2014 = vmatpush2.msra.mxu0 0.0
    %2015 = vmatprep.subr.mxu0 0.0
    %2016 = vmatpush2.msra.mxu0 0.0
    %2017 = vmatprep.subr.mxu0 0.0
    %2018 = vmatpush2.msra.mxu0 0.0
    %2019 = vmatprep.subr.mxu0 0.0
    %2020 = vmatpush2.msra.mxu0 0.0
    %2021 = vmatprep.subr.mxu0 0.0
    %2022 = vmatpush2.msra.mxu0 0.0
    %2023 = vmatprep.subr.mxu0 0.0
    %2024 = vmatpush2.msra.mxu0 0.0
    %2025 = vmatprep.subr.mxu0 0.0
    %2026 = vmatpush2.msra.mxu0 0.0
    %2027 = vmatprep.subr.mxu0 0.0
    %2028 = vmatpush2.msra.mxu0 0.0
    %2029 = vmatprep.mubr.f32.mxu0 0.0
    %2030 = vmatmul.mubr.f32.gmra.mxu0 %v668
    %v2031 = vpop.f32.mrf.mxu0
    %v2032 = vadd.f32 0.0, %v2031
    %v2033 = vpop.f32.mrf.mxu0
    %2034 = vmatprep.mubr.f32.mxu0 0.0
    %2035 = vmatmul.mubr.f32.gmra.mxu0 %v669
    %v2036 = vpop.f32.mrf.mxu0
    %v2037 = vadd.f32 0.0, %v2036
    %v2038 = vpop.f32.mrf.mxu0
    %2039 = vmatprep.mubr.f32.mxu0 0.0
    %2040 = vmatmul.mubr.f32.gmra.mxu0 %v670
    %v2041 = vpop.f32.mrf.mxu0
    %v2042 = vadd.f32 0.0, %v2041
    %v2043 = vpop.f32.mrf.mxu0
    %2044 = vmatprep.mubr.f32.mxu0 0.0
    %2045 = vmatmul.mubr.f32.gmra.mxu0 %v671
    %v2046 = vpop.f32.mrf.mxu0
    %v2047 = vadd.f32 0.0, %v2046
    %v2048 = vpop.f32.mrf.mxu0
    %2049 = vmatprep.mubr.f32.mxu0 0.0
    %2050 = vmatmul.mubr.f32.gmra.mxu0 %v672
    %v2051 = vpop.f32.mrf.mxu0
    %v2052 = vadd.f32 0.0, %v2051
    %v2053 = vpop.f32.mrf.mxu0
    %2054 = vmatprep.mubr.f32.mxu0 0.0
    %2055 = vmatmul.mubr.f32.gmra.mxu0 %v673
    %v2056 = vpop.f32.mrf.mxu0
    %v2057 = vadd.f32 0.0, %v2056
    %v2058 = vpop.f32.mrf.mxu0
    %2059 = vmatprep.mubr.f32.mxu0 0.0
    %2060 = vmatmul.mubr.f32.gmra.mxu0 %v674
    %v2061 = vpop.f32.mrf.mxu0
    %v2062 = vadd.f32 0.0, %v2061
    %v2063 = vpop.f32.mrf.mxu0
    %2064 = vmatprep.mubr.f32.mxu0 0.0
    %2065 = vmatmul.mubr.f32.gmra.mxu0 %v675
    %v2066 = vpop.f32.mrf.mxu0
    %v2067 = vadd.f32 0.0, %v2066
    %v2068 = vpop.f32.mrf.mxu0
    %2069 = vmatprep.mubr.f32.mxu0 0.0
    %2070 = vmatmul.mubr.f32.gmra.mxu0 %v676
    %v2071 = vpop.f32.mrf.mxu0
    %v2072 = vadd.f32 0.0, %v2071
    %v2073 = vpop.f32.mrf.mxu0
    %2074 = vmatprep.mubr.f32.mxu0 0.0
    %2075 = vmatmul.mubr.f32.gmra.mxu0 %v677
    %v2076 = vpop.f32.mrf.mxu0
    %v2077 = vadd.f32 0.0, %v2076
    %v2078 = vpop.f32.mrf.mxu0
    %2079 = vmatprep.mubr.f32.mxu0 0.0
    %2080 = vmatmul.mubr.f32.gmra.mxu0 %v678
    %v2081 = vpop.f32.mrf.mxu0
    %v2082 = vadd.f32 0.0, %v2081
    %v2083 = vpop.f32.mrf.mxu0
    %2084 = vmatprep.mubr.f32.mxu0 0.0
    %2085 = vmatmul.mubr.f32.gmra.mxu0 %v679
    %v2086 = vpop.f32.mrf.mxu0
    %v2087 = vadd.f32 0.0, %v2086
    %v2088 = vpop.f32.mrf.mxu0
    %2089 = vmatprep.mubr.f32.mxu0 0.0
    %2090 = vmatmul.mubr.f32.gmra.mxu0 %v680
    %v2091 = vpop.f32.mrf.mxu0
    %v2092 = vadd.f32 0.0, %v2091
    %v2093 = vpop.f32.mrf.mxu0
    %2094 = vmatprep.mubr.f32.mxu0 0.0
    %2095 = vmatmul.mubr.f32.gmra.mxu0 %v681
    %v2096 = vpop.f32.mrf.mxu0
    %v2097 = vadd.f32 0.0, %v2096
    %v2098 = vpop.f32.mrf.mxu0
    %2099 = vmatprep.mubr.f32.mxu0 0.0
    %2100 = vmatmul.mubr.f32.gmra.mxu0 %v682
    %v2101 = vpop.f32.mrf.mxu0
    %v2102 = vadd.f32 0.0, %v2101
    %v2103 = vpop.f32.mrf.mxu0
    %2104 = vmatprep.mubr.f32.mxu0 0.0
    %2105 = vmatmul.mubr.f32.gmra.mxu0 %v683
    %v2106 = vpop.f32.mrf.mxu0
    %v2107 = vadd.f32 0.0, %v2106
    %v2108 = vpop.f32.mrf.mxu0
    %2109 = vdwg.mxu0
    %v2110 = vadd.f32 %v1949, %v2032
    %v2111 = vadd.f32 %v1950, %v2037
    %v2112 = vadd.f32 %v1951, %v2042
    %v2113 = vadd.f32 %v1952, %v2047
    %v2114 = vadd.f32 %v1953, %v2052
    %v2115 = vadd.f32 %v1954, %v2057
    %v2116 = vadd.f32 %v1955, %v2062
    %v2117 = vadd.f32 %v1956, %v2067
    %v2118 = vadd.f32 %v1957, %v2072
    %v2119 = vadd.f32 %v1958, %v2077
    %v2120 = vadd.f32 %v1959, %v2082
    %v2121 = vadd.f32 %v1960, %v2087
    %v2122 = vadd.f32 %v1961, %v2092
    %v2123 = vadd.f32 %v1962, %v2097
    %v2124 = vadd.f32 %v1963, %v2102
    %v2125 = vadd.f32 %v1964, %v2107
    %2126 = vmatprep.subr.mxu0 0.0
    %2127 = vmatpush1.msra.mxu0 %v1793
    %2128 = vmatprep.subr.mxu0 0.0
    %2129 = vmatpush1.msra.mxu0 %v1787
    %2130 = vmatprep.subr.mxu0 0.0
    %2131 = vmatpush1.msra.mxu0 %v1781
    %2132 = vmatprep.subr.mxu0 0.0
    %2133 = vmatpush1.msra.mxu0 %v1775
    %2134 = vmatprep.subr.mxu0 0.0
    %2135 = vmatpush1.msra.mxu0 %v1769
    %2136 = vmatprep.subr.mxu0 0.0
    %2137 = vmatpush1.msra.mxu0 %v1763
    %2138 = vmatprep.subr.mxu0 0.0
    %2139 = vmatpush1.msra.mxu0 %v1757
    %2140 = vmatprep.subr.mxu0 0.0
    %2141 = vmatpush1.msra.mxu0 %v1751
    %2142 = vmatprep.subr.mxu0 0.0
    %2143 = vmatpush1.msra.mxu0 %v1745
    %2144 = vmatprep.subr.mxu0 0.0
    %2145 = vmatpush1.msra.mxu0 %v1739
    %2146 = vmatprep.subr.mxu0 0.0
    %2147 = vmatpush1.msra.mxu0 %v1733
    %2148 = vmatprep.subr.mxu0 0.0
    %2149 = vmatpush1.msra.mxu0 %v1727
    %2150 = vmatprep.subr.mxu0 0.0
    %2151 = vmatpush1.msra.mxu0 %v1721
    %2152 = vmatprep.subr.mxu0 0.0
    %2153 = vmatpush1.msra.mxu0 %v1715
    %2154 = vmatprep.subr.mxu0 0.0
    %2155 = vmatpush1.msra.mxu0 %v1709
    %2156 = vmatprep.subr.mxu0 0.0
    %2157 = vmatpush1.msra.mxu0 %v1703
    %2158 = vmatprep.subr.mxu0 0.0
    %2159 = vmatpush2.msra.mxu0 0.0
    %2160 = vmatprep.subr.mxu0 0.0
    %2161 = vmatpush2.msra.mxu0 0.0
    %2162 = vmatprep.subr.mxu0 0.0
    %2163 = vmatpush2.msra.mxu0 0.0
    %2164 = vmatprep.subr.mxu0 0.0
    %2165 = vmatpush2.msra.mxu0 0.0
    %2166 = vmatprep.subr.mxu0 0.0
    %2167 = vmatpush2.msra.mxu0 0.0
    %2168 = vmatprep.subr.mxu0 0.0
    %2169 = vmatpush2.msra.mxu0 0.0
    %2170 = vmatprep.subr.mxu0 0.0
    %2171 = vmatpush2.msra.mxu0 0.0
    %2172 = vmatprep.subr.mxu0 0.0
    %2173 = vmatpush2.msra.mxu0 0.0
    %2174 = vmatprep.subr.mxu0 0.0
    %2175 = vmatpush2.msra.mxu0 0.0
    %2176 = vmatprep.subr.mxu0 0.0
    %2177 = vmatpush2.msra.mxu0 0.0
    %2178 = vmatprep.subr.mxu0 0.0
    %2179 = vmatpush2.msra.mxu0 0.0
    %2180 = vmatprep.subr.mxu0 0.0
    %2181 = vmatpush2.msra.mxu0 0.0
    %2182 = vmatprep.subr.mxu0 0.0
    %2183 = vmatpush2.msra.mxu0 0.0
    %2184 = vmatprep.subr.mxu0 0.0
    %2185 = vmatpush2.msra.mxu0 0.0
    %2186 = vmatprep.subr.mxu0 0.0
    %2187 = vmatpush2.msra.mxu0 0.0
    %2188 = vmatprep.subr.mxu0 0.0
    %2189 = vmatpush2.msra.mxu0 0.0
    %2190 = vmatprep.mubr.f32.mxu0 0.0
    %2191 = vmatmul.mubr.f32.gmra.mxu0 %v846
    %v2192 = vpop.f32.mrf.mxu0
    %v2193 = vadd.f32 0.0, %v2192
    %v2194 = vpop.f32.mrf.mxu0
    %2195 = vmatprep.mubr.f32.mxu0 0.0
    %2196 = vmatmul.mubr.f32.gmra.mxu0 %v847
    %v2197 = vpop.f32.mrf.mxu0
    %v2198 = vadd.f32 0.0, %v2197
    %v2199 = vpop.f32.mrf.mxu0
    %2200 = vmatprep.mubr.f32.mxu0 0.0
    %2201 = vmatmul.mubr.f32.gmra.mxu0 %v848
    %v2202 = vpop.f32.mrf.mxu0
    %v2203 = vadd.f32 0.0, %v2202
    %v2204 = vpop.f32.mrf.mxu0
    %2205 = vmatprep.mubr.f32.mxu0 0.0
    %2206 = vmatmul.mubr.f32.gmra.mxu0 %v849
    %v2207 = vpop.f32.mrf.mxu0
    %v2208 = vadd.f32 0.0, %v2207
    %v2209 = vpop.f32.mrf.mxu0
    %2210 = vmatprep.mubr.f32.mxu0 0.0
    %2211 = vmatmul.mubr.f32.gmra.mxu0 %v850
    %v2212 = vpop.f32.mrf.mxu0
    %v2213 = vadd.f32 0.0, %v2212
    %v2214 = vpop.f32.mrf.mxu0
    %2215 = vmatprep.mubr.f32.mxu0 0.0
    %2216 = vmatmul.mubr.f32.gmra.mxu0 %v851
    %v2217 = vpop.f32.mrf.mxu0
    %v2218 = vadd.f32 0.0, %v2217
    %v2219 = vpop.f32.mrf.mxu0
    %2220 = vmatprep.mubr.f32.mxu0 0.0
    %2221 = vmatmul.mubr.f32.gmra.mxu0 %v852
    %v2222 = vpop.f32.mrf.mxu0
    %v2223 = vadd.f32 0.0, %v2222
    %v2224 = vpop.f32.mrf.mxu0
    %2225 = vmatprep.mubr.f32.mxu0 0.0
    %2226 = vmatmul.mubr.f32.gmra.mxu0 %v853
    %v2227 = vpop.f32.mrf.mxu0
    %v2228 = vadd.f32 0.0, %v2227
    %v2229 = vpop.f32.mrf.mxu0
    %2230 = vmatprep.mubr.f32.mxu0 0.0
    %2231 = vmatmul.mubr.f32.gmra.mxu0 %v854
    %v2232 = vpop.f32.mrf.mxu0
    %v2233 = vadd.f32 0.0, %v2232
    %v2234 = vpop.f32.mrf.mxu0
    %2235 = vmatprep.mubr.f32.mxu0 0.0
    %2236 = vmatmul.mubr.f32.gmra.mxu0 %v855
    %v2237 = vpop.f32.mrf.mxu0
    %v2238 = vadd.f32 0.0, %v2237
    %v2239 = vpop.f32.mrf.mxu0
    %2240 = vmatprep.mubr.f32.mxu0 0.0
    %2241 = vmatmul.mubr.f32.gmra.mxu0 %v856
    %v2242 = vpop.f32.mrf.mxu0
    %v2243 = vadd.f32 0.0, %v2242
    %v2244 = vpop.f32.mrf.mxu0
    %2245 = vmatprep.mubr.f32.mxu0 0.0
    %2246 = vmatmul.mubr.f32.gmra.mxu0 %v857
    %v2247 = vpop.f32.mrf.mxu0
    %v2248 = vadd.f32 0.0, %v2247
    %v2249 = vpop.f32.mrf.mxu0
    %2250 = vmatprep.mubr.f32.mxu0 0.0
    %2251 = vmatmul.mubr.f32.gmra.mxu0 %v858
    %v2252 = vpop.f32.mrf.mxu0
    %v2253 = vadd.f32 0.0, %v2252
    %v2254 = vpop.f32.mrf.mxu0
    %2255 = vmatprep.mubr.f32.mxu0 0.0
    %2256 = vmatmul.mubr.f32.gmra.mxu0 %v859
    %v2257 = vpop.f32.mrf.mxu0
    %v2258 = vadd.f32 0.0, %v2257
    %v2259 = vpop.f32.mrf.mxu0
    %2260 = vmatprep.mubr.f32.mxu0 0.0
    %2261 = vmatmul.mubr.f32.gmra.mxu0 %v860
    %v2262 = vpop.f32.mrf.mxu0
    %v2263 = vadd.f32 0.0, %v2262
    %v2264 = vpop.f32.mrf.mxu0
    %2265 = vmatprep.mubr.f32.mxu0 0.0
    %2266 = vmatmul.mubr.f32.gmra.mxu0 %v861
    %v2267 = vpop.f32.mrf.mxu0
    %v2268 = vadd.f32 0.0, %v2267
    %v2269 = vpop.f32.mrf.mxu0
    %2270 = vdwg.mxu0
    %v2271 = vadd.f32 %v2110, %v2193
    %v2272 = vadd.f32 %v2111, %v2198
    %v2273 = vadd.f32 %v2112, %v2203
    %v2274 = vadd.f32 %v2113, %v2208
    %v2275 = vadd.f32 %v2114, %v2213
    %v2276 = vadd.f32 %v2115, %v2218
    %v2277 = vadd.f32 %v2116, %v2223
    %v2278 = vadd.f32 %v2117, %v2228
    %v2279 = vadd.f32 %v2118, %v2233
    %v2280 = vadd.f32 %v2119, %v2238
    %v2281 = vadd.f32 %v2120, %v2243
    %v2282 = vadd.f32 %v2121, %v2248
    %v2283 = vadd.f32 %v2122, %v2253
    %v2284 = vadd.f32 %v2123, %v2258
    %v2285 = vadd.f32 %v2124, %v2263
    %v2286 = vadd.f32 %v2125, %v2268
    %2287 = vmatprep.subr.mxu0 0.0
    %2288 = vmatpush1.msra.mxu0 %v1795
    %2289 = vmatprep.subr.mxu0 0.0
    %2290 = vmatpush1.msra.mxu0 %v1789
    %2291 = vmatprep.subr.mxu0 0.0
    %2292 = vmatpush1.msra.mxu0 %v1783
    %2293 = vmatprep.subr.mxu0 0.0
    %2294 = vmatpush1.msra.mxu0 %v1777
    %2295 = vmatprep.subr.mxu0 0.0
    %2296 = vmatpush1.msra.mxu0 %v1771
    %2297 = vmatprep.subr.mxu0 0.0
    %2298 = vmatpush1.msra.mxu0 %v1765
    %2299 = vmatprep.subr.mxu0 0.0
    %2300 = vmatpush1.msra.mxu0 %v1759
    %2301 = vmatprep.subr.mxu0 0.0
    %2302 = vmatpush1.msra.mxu0 %v1753
    %2303 = vmatprep.subr.mxu0 0.0
    %2304 = vmatpush1.msra.mxu0 %v1747
    %2305 = vmatprep.subr.mxu0 0.0
    %2306 = vmatpush1.msra.mxu0 %v1741
    %2307 = vmatprep.subr.mxu0 0.0
    %2308 = vmatpush1.msra.mxu0 %v1735
    %2309 = vmatprep.subr.mxu0 0.0
    %2310 = vmatpush1.msra.mxu0 %v1729
    %2311 = vmatprep.subr.mxu0 0.0
    %2312 = vmatpush1.msra.mxu0 %v1723
    %2313 = vmatprep.subr.mxu0 0.0
    %2314 = vmatpush1.msra.mxu0 %v1717
    %2315 = vmatprep.subr.mxu0 0.0
    %2316 = vmatpush1.msra.mxu0 %v1711
    %2317 = vmatprep.subr.mxu0 0.0
    %2318 = vmatpush1.msra.mxu0 %v1705
    %2319 = vmatprep.subr.mxu0 0.0
    %2320 = vmatpush2.msra.mxu0 0.0
    %2321 = vmatprep.subr.mxu0 0.0
    %2322 = vmatpush2.msra.mxu0 0.0
    %2323 = vmatprep.subr.mxu0 0.0
    %2324 = vmatpush2.msra.mxu0 0.0
    %2325 = vmatprep.subr.mxu0 0.0
    %2326 = vmatpush2.msra.mxu0 0.0
    %2327 = vmatprep.subr.mxu0 0.0
    %2328 = vmatpush2.msra.mxu0 0.0
    %2329 = vmatprep.subr.mxu0 0.0
    %2330 = vmatpush2.msra.mxu0 0.0
    %2331 = vmatprep.subr.mxu0 0.0
    %2332 = vmatpush2.msra.mxu0 0.0
    %2333 = vmatprep.subr.mxu0 0.0
    %2334 = vmatpush2.msra.mxu0 0.0
    %2335 = vmatprep.subr.mxu0 0.0
    %2336 = vmatpush2.msra.mxu0 0.0
    %2337 = vmatprep.subr.mxu0 0.0
    %2338 = vmatpush2.msra.mxu0 0.0
    %2339 = vmatprep.subr.mxu0 0.0
    %2340 = vmatpush2.msra.mxu0 0.0
    %2341 = vmatprep.subr.mxu0 0.0
    %2342 = vmatpush2.msra.mxu0 0.0
    %2343 = vmatprep.subr.mxu0 0.0
    %2344 = vmatpush2.msra.mxu0 0.0
    %2345 = vmatprep.subr.mxu0 0.0
    %2346 = vmatpush2.msra.mxu0 0.0
    %2347 = vmatprep.subr.mxu0 0.0
    %2348 = vmatpush2.msra.mxu0 0.0
    %2349 = vmatprep.subr.mxu0 0.0
    %2350 = vmatpush2.msra.mxu0 0.0
    %2351 = vmatprep.mubr.f32.mxu0 0.0
    %2352 = vmatmul.mubr.f32.gmra.mxu0 %v1024
    %v2353 = vpop.f32.mrf.mxu0
    %v2354 = vadd.f32 0.0, %v2353
    %v2355 = vpop.f32.mrf.mxu0
    %2356 = vmatprep.mubr.f32.mxu0 0.0
    %2357 = vmatmul.mubr.f32.gmra.mxu0 %v1025
    %v2358 = vpop.f32.mrf.mxu0
    %v2359 = vadd.f32 0.0, %v2358
    %v2360 = vpop.f32.mrf.mxu0
    %2361 = vmatprep.mubr.f32.mxu0 0.0
    %2362 = vmatmul.mubr.f32.gmra.mxu0 %v1026
    %v2363 = vpop.f32.mrf.mxu0
    %v2364 = vadd.f32 0.0, %v2363
    %v2365 = vpop.f32.mrf.mxu0
    %2366 = vmatprep.mubr.f32.mxu0 0.0
    %2367 = vmatmul.mubr.f32.gmra.mxu0 %v1027
    %v2368 = vpop.f32.mrf.mxu0
    %v2369 = vadd.f32 0.0, %v2368
    %v2370 = vpop.f32.mrf.mxu0
    %2371 = vmatprep.mubr.f32.mxu0 0.0
    %2372 = vmatmul.mubr.f32.gmra.mxu0 %v1028
    %v2373 = vpop.f32.mrf.mxu0
    %v2374 = vadd.f32 0.0, %v2373
    %v2375 = vpop.f32.mrf.mxu0
    %2376 = vmatprep.mubr.f32.mxu0 0.0
    %2377 = vmatmul.mubr.f32.gmra.mxu0 %v1029
    %v2378 = vpop.f32.mrf.mxu0
    %v2379 = vadd.f32 0.0, %v2378
    %v2380 = vpop.f32.mrf.mxu0
    %2381 = vmatprep.mubr.f32.mxu0 0.0
    %2382 = vmatmul.mubr.f32.gmra.mxu0 %v1030
    %v2383 = vpop.f32.mrf.mxu0
    %v2384 = vadd.f32 0.0, %v2383
    %v2385 = vpop.f32.mrf.mxu0
    %2386 = vmatprep.mubr.f32.mxu0 0.0
    %2387 = vmatmul.mubr.f32.gmra.mxu0 %v1031
    %v2388 = vpop.f32.mrf.mxu0
    %v2389 = vadd.f32 0.0, %v2388
    %v2390 = vpop.f32.mrf.mxu0
    %2391 = vmatprep.mubr.f32.mxu0 0.0
    %2392 = vmatmul.mubr.f32.gmra.mxu0 %v1032
    %v2393 = vpop.f32.mrf.mxu0
    %v2394 = vadd.f32 0.0, %v2393
    %v2395 = vpop.f32.mrf.mxu0
    %2396 = vmatprep.mubr.f32.mxu0 0.0
    %2397 = vmatmul.mubr.f32.gmra.mxu0 %v1033
    %v2398 = vpop.f32.mrf.mxu0
    %v2399 = vadd.f32 0.0, %v2398
    %v2400 = vpop.f32.mrf.mxu0
    %2401 = vmatprep.mubr.f32.mxu0 0.0
    %2402 = vmatmul.mubr.f32.gmra.mxu0 %v1034
    %v2403 = vpop.f32.mrf.mxu0
    %v2404 = vadd.f32 0.0, %v2403
    %v2405 = vpop.f32.mrf.mxu0
    %2406 = vmatprep.mubr.f32.mxu0 0.0
    %2407 = vmatmul.mubr.f32.gmra.mxu0 %v1035
    %v2408 = vpop.f32.mrf.mxu0
    %v2409 = vadd.f32 0.0, %v2408
    %v2410 = vpop.f32.mrf.mxu0
    %2411 = vmatprep.mubr.f32.mxu0 0.0
    %2412 = vmatmul.mubr.f32.gmra.mxu0 %v1036
    %v2413 = vpop.f32.mrf.mxu0
    %v2414 = vadd.f32 0.0, %v2413
    %v2415 = vpop.f32.mrf.mxu0
    %2416 = vmatprep.mubr.f32.mxu0 0.0
    %2417 = vmatmul.mubr.f32.gmra.mxu0 %v1037
    %v2418 = vpop.f32.mrf.mxu0
    %v2419 = vadd.f32 0.0, %v2418
    %v2420 = vpop.f32.mrf.mxu0
    %2421 = vmatprep.mubr.f32.mxu0 0.0
    %2422 = vmatmul.mubr.f32.gmra.mxu0 %v1038
    %v2423 = vpop.f32.mrf.mxu0
    %v2424 = vadd.f32 0.0, %v2423
    %v2425 = vpop.f32.mrf.mxu0
    %2426 = vmatprep.mubr.f32.mxu0 0.0
    %2427 = vmatmul.mubr.f32.gmra.mxu0 %v1039
    %v2428 = vpop.f32.mrf.mxu0
    %v2429 = vadd.f32 0.0, %v2428
    %v2430 = vpop.f32.mrf.mxu0
    %2431 = vdwg.mxu0
    %v2432 = vadd.f32 %v2271, %v2354
    %v2433 = vadd.f32 %v2272, %v2359
    %v2434 = vadd.f32 %v2273, %v2364
    %v2435 = vadd.f32 %v2274, %v2369
    %v2436 = vadd.f32 %v2275, %v2374
    %v2437 = vadd.f32 %v2276, %v2379
    %v2438 = vadd.f32 %v2277, %v2384
    %v2439 = vadd.f32 %v2278, %v2389
    %v2440 = vadd.f32 %v2279, %v2394
    %v2441 = vadd.f32 %v2280, %v2399
    %v2442 = vadd.f32 %v2281, %v2404
    %v2443 = vadd.f32 %v2282, %v2409
    %v2444 = vadd.f32 %v2283, %v2414
    %v2445 = vadd.f32 %v2284, %v2419
    %v2446 = vadd.f32 %v2285, %v2424
    %v2447 = vadd.f32 %v2286, %v2429
    %2448 = vmatprep.subr.mxu0 0.0
    %2449 = vmatpush1.msra.mxu0 %v1939
    %2450 = vmatprep.subr.mxu0 0.0
    %2451 = vmatpush1.msra.mxu0 %v1934
    %2452 = vmatprep.subr.mxu0 0.0
    %2453 = vmatpush1.msra.mxu0 %v1929
    %2454 = vmatprep.subr.mxu0 0.0
    %2455 = vmatpush1.msra.mxu0 %v1924
    %2456 = vmatprep.subr.mxu0 0.0
    %2457 = vmatpush1.msra.mxu0 %v1919
    %2458 = vmatprep.subr.mxu0 0.0
    %2459 = vmatpush1.msra.mxu0 %v1914
    %2460 = vmatprep.subr.mxu0 0.0
    %2461 = vmatpush1.msra.mxu0 %v1909
    %2462 = vmatprep.subr.mxu0 0.0
    %2463 = vmatpush1.msra.mxu0 %v1904
    %2464 = vmatprep.subr.mxu0 0.0
    %2465 = vmatpush1.msra.mxu0 %v1899
    %2466 = vmatprep.subr.mxu0 0.0
    %2467 = vmatpush1.msra.mxu0 %v1894
    %2468 = vmatprep.subr.mxu0 0.0
    %2469 = vmatpush1.msra.mxu0 %v1889
    %2470 = vmatprep.subr.mxu0 0.0
    %2471 = vmatpush1.msra.mxu0 %v1884
    %2472 = vmatprep.subr.mxu0 0.0
    %2473 = vmatpush1.msra.mxu0 %v1879
    %2474 = vmatprep.subr.mxu0 0.0
    %2475 = vmatpush1.msra.mxu0 %v1874
    %2476 = vmatprep.subr.mxu0 0.0
    %2477 = vmatpush1.msra.mxu0 %v1869
    %2478 = vmatprep.subr.mxu0 0.0
    %2479 = vmatpush1.msra.mxu0 %v1864
    %2480 = vmatprep.subr.mxu0 0.0
    %2481 = vmatpush2.msra.mxu0 0.0
    %2482 = vmatprep.subr.mxu0 0.0
    %2483 = vmatpush2.msra.mxu0 0.0
    %2484 = vmatprep.subr.mxu0 0.0
    %2485 = vmatpush2.msra.mxu0 0.0
    %2486 = vmatprep.subr.mxu0 0.0
    %2487 = vmatpush2.msra.mxu0 0.0
    %2488 = vmatprep.subr.mxu0 0.0
    %2489 = vmatpush2.msra.mxu0 0.0
    %2490 = vmatprep.subr.mxu0 0.0
    %2491 = vmatpush2.msra.mxu0 0.0
    %2492 = vmatprep.subr.mxu0 0.0
    %2493 = vmatpush2.msra.mxu0 0.0
    %2494 = vmatprep.subr.mxu0 0.0
    %2495 = vmatpush2.msra.mxu0 0.0
    %2496 = vmatprep.subr.mxu0 0.0
    %2497 = vmatpush2.msra.mxu0 0.0
    %2498 = vmatprep.subr.mxu0 0.0
    %2499 = vmatpush2.msra.mxu0 0.0
    %2500 = vmatprep.subr.mxu0 0.0
    %2501 = vmatpush2.msra.mxu0 0.0
    %2502 = vmatprep.subr.mxu0 0.0
    %2503 = vmatpush2.msra.mxu0 0.0
    %2504 = vmatprep.subr.mxu0 0.0
    %2505 = vmatpush2.msra.mxu0 0.0
    %2506 = vmatprep.subr.mxu0 0.0
    %2507 = vmatpush2.msra.mxu0 0.0
    %2508 = vmatprep.subr.mxu0 0.0
    %2509 = vmatpush2.msra.mxu0 0.0
    %2510 = vmatprep.subr.mxu0 0.0
    %2511 = vmatpush2.msra.mxu0 0.0
    %2512 = vmatprep.mubr.f32.mxu0 0.0
    %2513 = vmatmul.mubr.f32.gmra.mxu0 %v1202
    %v2514 = vpop.f32.mrf.mxu0
    %v2515 = vadd.f32 0.0, %v2514
    %v2516 = vpop.f32.mrf.mxu0
    %2517 = vmatprep.mubr.f32.mxu0 0.0
    %2518 = vmatmul.mubr.f32.gmra.mxu0 %v1203
    %v2519 = vpop.f32.mrf.mxu0
    %v2520 = vadd.f32 0.0, %v2519
    %v2521 = vpop.f32.mrf.mxu0
    %2522 = vmatprep.mubr.f32.mxu0 0.0
    %2523 = vmatmul.mubr.f32.gmra.mxu0 %v1204
    %v2524 = vpop.f32.mrf.mxu0
    %v2525 = vadd.f32 0.0, %v2524
    %v2526 = vpop.f32.mrf.mxu0
    %2527 = vmatprep.mubr.f32.mxu0 0.0
    %2528 = vmatmul.mubr.f32.gmra.mxu0 %v1205
    %v2529 = vpop.f32.mrf.mxu0
    %v2530 = vadd.f32 0.0, %v2529
    %v2531 = vpop.f32.mrf.mxu0
    %2532 = vmatprep.mubr.f32.mxu0 0.0
    %2533 = vmatmul.mubr.f32.gmra.mxu0 %v1206
    %v2534 = vpop.f32.mrf.mxu0
    %v2535 = vadd.f32 0.0, %v2534
    %v2536 = vpop.f32.mrf.mxu0
    %2537 = vmatprep.mubr.f32.mxu0 0.0
    %2538 = vmatmul.mubr.f32.gmra.mxu0 %v1207
    %v2539 = vpop.f32.mrf.mxu0
    %v2540 = vadd.f32 0.0, %v2539
    %v2541 = vpop.f32.mrf.mxu0
    %2542 = vmatprep.mubr.f32.mxu0 0.0
    %2543 = vmatmul.mubr.f32.gmra.mxu0 %v1208
    %v2544 = vpop.f32.mrf.mxu0
    %v2545 = vadd.f32 0.0, %v2544
    %v2546 = vpop.f32.mrf.mxu0
    %2547 = vmatprep.mubr.f32.mxu0 0.0
    %2548 = vmatmul.mubr.f32.gmra.mxu0 %v1209
    %v2549 = vpop.f32.mrf.mxu0
    %v2550 = vadd.f32 0.0, %v2549
    %v2551 = vpop.f32.mrf.mxu0
    %2552 = vmatprep.mubr.f32.mxu0 0.0
    %2553 = vmatmul.mubr.f32.gmra.mxu0 %v1210
    %v2554 = vpop.f32.mrf.mxu0
    %v2555 = vadd.f32 0.0, %v2554
    %v2556 = vpop.f32.mrf.mxu0
    %2557 = vmatprep.mubr.f32.mxu0 0.0
    %2558 = vmatmul.mubr.f32.gmra.mxu0 %v1211
    %v2559 = vpop.f32.mrf.mxu0
    %v2560 = vadd.f32 0.0, %v2559
    %v2561 = vpop.f32.mrf.mxu0
    %2562 = vmatprep.mubr.f32.mxu0 0.0
    %2563 = vmatmul.mubr.f32.gmra.mxu0 %v1212
    %v2564 = vpop.f32.mrf.mxu0
    %v2565 = vadd.f32 0.0, %v2564
    %v2566 = vpop.f32.mrf.mxu0
    %2567 = vmatprep.mubr.f32.mxu0 0.0
    %2568 = vmatmul.mubr.f32.gmra.mxu0 %v1213
    %v2569 = vpop.f32.mrf.mxu0
    %v2570 = vadd.f32 0.0, %v2569
    %v2571 = vpop.f32.mrf.mxu0
    %2572 = vmatprep.mubr.f32.mxu0 0.0
    %2573 = vmatmul.mubr.f32.gmra.mxu0 %v1214
    %v2574 = vpop.f32.mrf.mxu0
    %v2575 = vadd.f32 0.0, %v2574
    %v2576 = vpop.f32.mrf.mxu0
    %2577 = vmatprep.mubr.f32.mxu0 0.0
    %2578 = vmatmul.mubr.f32.gmra.mxu0 %v1215
    %v2579 = vpop.f32.mrf.mxu0
    %v2580 = vadd.f32 0.0, %v2579
    %v2581 = vpop.f32.mrf.mxu0
    %2582 = vmatprep.mubr.f32.mxu0 0.0
    %2583 = vmatmul.mubr.f32.gmra.mxu0 %v1216
    %v2584 = vpop.f32.mrf.mxu0
    %v2585 = vadd.f32 0.0, %v2584
    %v2586 = vpop.f32.mrf.mxu0
    %2587 = vmatprep.mubr.f32.mxu0 0.0
    %2588 = vmatmul.mubr.f32.gmra.mxu0 %v1217
    %v2589 = vpop.f32.mrf.mxu0
    %v2590 = vadd.f32 0.0, %v2589
    %v2591 = vpop.f32.mrf.mxu0
    %2592 = vdwg.mxu0
    %v2593 = vadd.f32 %v2432, %v2515
    %v2594 = vadd.f32 %v2433, %v2520
    %v2595 = vadd.f32 %v2434, %v2525
    %v2596 = vadd.f32 %v2435, %v2530
    %v2597 = vadd.f32 %v2436, %v2535
    %v2598 = vadd.f32 %v2437, %v2540
    %v2599 = vadd.f32 %v2438, %v2545
    %v2600 = vadd.f32 %v2439, %v2550
    %v2601 = vadd.f32 %v2440, %v2555
    %v2602 = vadd.f32 %v2441, %v2560
    %v2603 = vadd.f32 %v2442, %v2565
    %v2604 = vadd.f32 %v2443, %v2570
    %v2605 = vadd.f32 %v2444, %v2575
    %v2606 = vadd.f32 %v2445, %v2580
    %v2607 = vadd.f32 %v2446, %v2585
    %v2608 = vadd.f32 %v2447, %v2590
    %v2609 = vmax.f32 %v2593, 0.0
    %v2610 = vmax.f32 %v2594, 0.0
    %v2611 = vmax.f32 %v2595, 0.0
    %v2612 = vmax.f32 %v2596, 0.0
    %v2613 = vmax.f32 %v2597, 0.0
    %v2614 = vmax.f32 %v2598, 0.0
    %v2615 = vmax.f32 %v2599, 0.0
    %v2616 = vmax.f32 %v2600, 0.0
    %v2617 = vmax.f32 %v2601, 0.0
    %v2618 = vmax.f32 %v2602, 0.0
    %v2619 = vmax.f32 %v2603, 0.0
    %v2620 = vmax.f32 %v2604, 0.0
    %v2621 = vmax.f32 %v2605, 0.0
    %v2622 = vmax.f32 %v2606, 0.0
    %v2623 = vmax.f32 %v2607, 0.0
    %v2624 = vmax.f32 %v2608, 0.0
    %v2625 = vld [vmem:[%s6] sm:$0x3]
    %2626 = vmatprep.subr.mxu0 0.0
    %2627 = vmatpush1.msra.mxu0 %v2624
    %2628 = vmatprep.subr.mxu0 0.0
    %2629 = vmatpush1.msra.mxu0 %v2623
    %2630 = vmatprep.subr.mxu0 0.0
    %2631 = vmatpush1.msra.mxu0 %v2622
    %2632 = vmatprep.subr.mxu0 0.0
    %2633 = vmatpush1.msra.mxu0 %v2621
    %2634 = vmatprep.subr.mxu0 0.0
    %2635 = vmatpush1.msra.mxu0 %v2620
    %2636 = vmatprep.subr.mxu0 0.0
    %2637 = vmatpush1.msra.mxu0 %v2619
    %2638 = vmatprep.subr.mxu0 0.0
    %2639 = vmatpush1.msra.mxu0 %v2618
    %2640 = vmatprep.subr.mxu0 0.0
    %2641 = vmatpush1.msra.mxu0 %v2617
    %2642 = vmatprep.subr.mxu0 0.0
    %2643 = vmatpush1.msra.mxu0 %v2616
    %2644 = vmatprep.subr.mxu0 0.0
    %2645 = vmatpush1.msra.mxu0 %v2615
    %2646 = vmatprep.subr.mxu0 0.0
    %2647 = vmatpush1.msra.mxu0 %v2614
    %2648 = vmatprep.subr.mxu0 0.0
    %2649 = vmatpush1.msra.mxu0 %v2613
    %2650 = vmatprep.subr.mxu0 0.0
    %2651 = vmatpush1.msra.mxu0 %v2612
    %2652 = vmatprep.subr.mxu0 0.0
    %2653 = vmatpush1.msra.mxu0 %v2611
    %2654 = vmatprep.subr.mxu0 0.0
    %2655 = vmatpush1.msra.mxu0 %v2610
    %2656 = vmatprep.subr.mxu0 0.0
    %2657 = vmatpush1.msra.mxu0 %v2609
    %2658 = vmatprep.subr.mxu0 0.0
    %2659 = vmatpush2.msra.mxu0 0.0
    %2660 = vmatprep.subr.mxu0 0.0
    %2661 = vmatpush2.msra.mxu0 0.0
    %2662 = vmatprep.subr.mxu0 0.0
    %2663 = vmatpush2.msra.mxu0 0.0
    %2664 = vmatprep.subr.mxu0 0.0
    %2665 = vmatpush2.msra.mxu0 0.0
    %2666 = vmatprep.subr.mxu0 0.0
    %2667 = vmatpush2.msra.mxu0 0.0
    %2668 = vmatprep.subr.mxu0 0.0
    %2669 = vmatpush2.msra.mxu0 0.0
    %2670 = vmatprep.subr.mxu0 0.0
    %2671 = vmatpush2.msra.mxu0 0.0
    %2672 = vmatprep.subr.mxu0 0.0
    %2673 = vmatpush2.msra.mxu0 0.0
    %2674 = vmatprep.subr.mxu0 0.0
    %2675 = vmatpush2.msra.mxu0 0.0
    %2676 = vmatprep.subr.mxu0 0.0
    %2677 = vmatpush2.msra.mxu0 0.0
    %2678 = vmatprep.subr.mxu0 0.0
    %2679 = vmatpush2.msra.mxu0 0.0
    %2680 = vmatprep.subr.mxu0 0.0
    %2681 = vmatpush2.msra.mxu0 0.0
    %2682 = vmatprep.subr.mxu0 0.0
    %2683 = vmatpush2.msra.mxu0 0.0
    %2684 = vmatprep.subr.mxu0 0.0
    %2685 = vmatpush2.msra.mxu0 0.0
    %2686 = vmatprep.subr.mxu0 0.0
    %2687 = vmatpush2.msra.mxu0 0.0
    %2688 = vmatprep.subr.mxu0 0.0
    %2689 = vmatpush2.msra.mxu0 0.0
    %2690 = vmatprep.mubr.f32.mxu0 0.0
    %2691 = vmatmul.mubr.f32.gmra.mxu0 %v2625
    %v2692 = vpop.f32.mrf.mxu0
    %v2693 = vadd.f32 0.0, %v2692
    %v2694 = vpop.f32.mrf.mxu0
    %2695 = vdwg.mxu0
    %2696 = vst [vmem:[#allocation10] sm:$0x3] %v2693
    // Predicated region
    $region46: #{tpu_custom_call.1} parent=1 // pred_check
      _
    $region47: #{tpu_custom_call.1} parent=1 // pred_check_branch
      %2698 = sbr.rel (0) target = $region49
    $region48: #{tpu_custom_call.1} parent=1 // pred_region
      %s2700 = ssub.s32 32, 32
      %2701 = vsyncadd [#allocation4], %s2700
      %s2703 = sshll.u32 [#allocation10], 4
      %s2704 = int_to_ptr.vmem [resolvable:$true] %s2703
      %2706 = dma.vmem_to_hbm [thread:$0]  %s2704, 32, %s7, [#allocation4]
    $region49: #{tpu_custom_call.1} parent=1 // pred_fallthru
      _
    // Predicated region
    $region50: #{tpu_custom_call.1} parent=1 // pred_check
      _
    $region51: #{tpu_custom_call.1} parent=1 // pred_check_branch
      %2708 = sbr.rel (0) target = $region53
    $region52: #{tpu_custom_call.1} parent=1 // pred_region
      %2709 = dma.done [#allocation4], 32
    $region53: #{tpu_custom_call.1} parent=1 // pred_fallthru
      _
    %2710 = vsyncpa [#allocation3], 1
    %2711 = vsyncpa [#allocation6], 1
    %2712 = vsyncpa [#allocation9], 1
    %2713 = vsyncpa [#allocation4], 1

</llo_original>
